<compile_context>
chip_gen: v7x
topology: tpu7x:2x2x1
jax: 0.10.0
libtpu: 0.0.40
codegen_flags: <defaults>
</compile_context>

<pallas_src>
import jax
import jax.numpy as jnp
from jax import lax
from jax.experimental import pallas as pl
from jax.experimental.pallas import tpu as pltpu


def _round_up(a, b):
    return (a + b - 1) // b * b


def _make_kernel(T, B, F, H, L, n_ff, S, O, layout):
    """Builds the Pallas kernel closure for the given static sizes."""
    H4 = 4 * H

    def kernel(*refs):
        (x_ref, h0_ref, c0_ref, static_ref, slab_ref,
         out_ref, hn_ref, cn_ref) = refs[:8]
        seq_refs = refs[8:]                    # (T*B, H) handoff scratch bufs

        def load_block(name):
            off, rows, cols, pad_rows = layout[name]
            blk = slab_ref[off:off + pad_rows, :]   # aligned (8k, 128) load
            return blk[:rows, :cols]                # static value slice

        def run_layer(l, in2d, out_seq_ref):
            """in2d: (T*B, Fin) f32 value.  Fills hn/cn[l]; returns h_T."""
            w_ih = load_block(f"w_ih_{l}")                        # (Fin, 4H)
            # 1-pass bf16 MXU for the recurrent (critical-path) dot; cast once
            # per layer, outside the time loop.
            w_hh = load_block(f"w_hh_{l}").astype(jnp.bfloat16)   # (H, 4H)
            b = load_block(f"b_{l}")                              # (1, 4H)

            # Hoisted input projection + bias: one matmul covers all T steps.
            # Kept as an SSA value (review #1: no scratch round-trip).
            gx = jnp.dot(in2d, w_ih, preferred_element_type=jnp.float32) + b

            h = h0_ref[l].astype(jnp.float32)
            c = c0_ref[l].astype(jnp.float32)

            # Static unroll: L*T is small here.
            # TODO(synk): for long sequences switch to a bounded-unroll
            # fori_loop with a gx scratch to limit code size / vreg pressure.
            for t in range(T):
                gates = gx[t * B:(t + 1) * B, :] + jnp.dot(
                    h.astype(jnp.bfloat16), w_hh,
                    preferred_element_type=jnp.float32)           # (B, 4H)
                sg = jax.nn.sigmoid(gates)     # one full-width EUP pass
                th = jnp.tanh(gates)           # one full-width EUP pass
                i_g = sg[:, 0 * H:1 * H]
                f_g = sg[:, 1 * H:2 * H]
                g_g = th[:, 2 * H:3 * H]
                o_g = sg[:, 3 * H:4 * H]
                c = f_g * c + i_g * g_g
                h = o_g * jnp.tanh(c)
                if out_seq_ref is not None:
                    # Store-only handoff (review #2): the consumer does one
                    # contiguous (T*B, H) load, no concat / relayout.
                    out_seq_ref[t * B:(t + 1) * B, :] = h
            hn_ref[l] = h
            cn_ref[l] = c
            return h

        if L == 1:
            last = run_layer(0, x_ref[...], None)
        else:
            run_layer(0, x_ref[...], seq_refs[0])
            last = None
            nbuf = len(seq_refs)
            for l in range(1, L):
                in2d = seq_refs[(l - 1) % nbuf][...]   # one contiguous load
                out_seq = seq_refs[l % nbuf] if l < L - 1 else None
                last = run_layer(l, in2d, out_seq)

        # lstm_out[:, -1, :] == top layer's h_T; dropout = identity (eval).
        wh0 = load_block("ff0_wh")                               # (H, H)
        ws0 = load_block("ff0_ws")                               # (S, H)
        b0 = load_block("ff0_b")                                 # (1, H)
        out = (jnp.dot(last, wh0, preferred_element_type=jnp.float32)
               + jnp.dot(static_ref[...], ws0,
                         preferred_element_type=jnp.float32)
               + b0)
        for i in range(1, n_ff - 1):
            w = load_block(f"ff{i}_w")
            bb = load_block(f"ff{i}_b")
            out = jnp.dot(out, w, preferred_element_type=jnp.float32) + bb
        wf = load_block("final_w")                               # (H, O)
        bf = load_block("final_b")                               # (1, O)
        out_ref[...] = (jnp.dot(out, wf, preferred_element_type=jnp.float32)
                        + bf)

    return kernel


def _pack_params(lstm_params, ff_params, final_w, final_b, H):
    """Packs every weight/bias into ONE lane-128, 8-row-aligned f32 slab.

    Returns (slab, layout) where layout[name] = (row_off, rows, cols, pad_rows)
    with row_off a multiple of 8, so every in-kernel slice is tile-aligned.
    """
    H4 = 4 * H
    lanes = max(128, _round_up(H4, 128))

    blocks = []  # (name, 2-D f32 array with its true shape)
    for l, (w_ih, w_hh, b) in enumerate(lstm_params):
        blocks.append((f"w_ih_{l}", jnp.asarray(w_ih, jnp.float32).T))   # (Fin,4H)
        blocks.append((f"w_hh_{l}", jnp.asarray(w_hh, jnp.float32).T))   # (H,4H)
        blocks.append((f"b_{l}", jnp.asarray(b, jnp.float32).reshape(1, H4)))

    # First FF layer: split [hidden | static] so the kernel avoids a lane concat.
    w0_t = jnp.asarray(ff_params[0][0], jnp.float32).T                   # (H+S, H)
    blocks.append(("ff0_wh", w0_t[:H, :]))
    blocks.append(("ff0_ws", w0_t[H:, :]))
    blocks.append(("ff0_b",
                   jnp.asarray(ff_params[0][1], jnp.float32).reshape(1, H)))
    for i, (w, b) in enumerate(ff_params[1:], start=1):
        blocks.append((f"ff{i}_w", jnp.asarray(w, jnp.float32).T))
        blocks.append((f"ff{i}_b", jnp.asarray(b, jnp.float32).reshape(1, -1)))
    blocks.append(("final_w", jnp.asarray(final_w, jnp.float32).T))
    blocks.append(("final_b", jnp.asarray(final_b, jnp.float32).reshape(1, -1)))

    layout = {}
    off = 0
    for name, arr in blocks:
        r, c = arr.shape
        assert c <= lanes
        layout[name] = (off, r, c, _round_up(r, 8))
        off += _round_up(r, 8)

    slab = jnp.zeros((off, lanes), jnp.float32)
    for name, arr in blocks:
        o, r, c, _ = layout[name]
        slab = slab.at[o:o + r, :c].set(arr)
    return slab, layout


def drought_net_lstm_forward(x, hidden, static, lstm_params, ff_params,
                             final_w, final_b):
    """Wrapper mirroring DroughtNetLSTM.forward(x, hidden, static)."""
    h0, c0 = hidden
    B, T, F = x.shape
    L, _, H = h0.shape
    S = static.shape[1]
    O = final_w.shape[0]
    n_ff = len(ff_params) + 1
    assert n_ff >= 2, "kernel assumes at least one intermediate FF layer"

    # Time-major, flattened: each layer's input projection becomes one
    # lane-dense (T*B, Fin) @ (Fin, 4H) matmul inside the kernel.
    x2d = jnp.transpose(x.astype(jnp.float32), (1, 0, 2)).reshape(T * B, F)

    slab, layout = _pack_params(lstm_params, ff_params, final_w, final_b, H)
    kernel = _make_kernel(T, B, F, H, L, n_ff, S, O, layout)

    vmem = pl.BlockSpec(memory_space=pltpu.MemorySpace.VMEM)
    out_shapes = (jax.ShapeDtypeStruct((B, O), jnp.float32),
                  jax.ShapeDtypeStruct((L, B, H), jnp.float32),
                  jax.ShapeDtypeStruct((L, B, H), jnp.float32))

    n_seq = 0 if L == 1 else min(L - 1, 2)
    scratch = [pltpu.VMEM((T * B, H), jnp.float32) for _ in range(n_seq)]

    # Advisory cost hint: tiny, latency-bound kernel.
    flops = 0
    for l in range(L):
        fin = F if l == 0 else H
        flops += 2 * T * B * 4 * H * (fin + H)
    flops += 2 * B * H * (H + S) + (n_ff - 2) * 2 * B * H * H + 2 * B * O * H
    transcendentals = L * T * (2 * B * 4 * H + B * H)
    bytes_accessed = 4 * (int(x2d.size) + int(h0.size) + int(c0.size)
                          + int(static.size) + int(slab.size)
                          + B * O + 2 * L * B * H)

    inputs = (x2d, h0.astype(jnp.float32), c0.astype(jnp.float32),
              static.astype(jnp.float32), slab)

    out, hn, cn = pl.pallas_call(
        kernel,
        out_shape=out_shapes,
        in_specs=[vmem] * len(inputs),
        out_specs=(vmem, vmem, vmem),
        scratch_shapes=scratch,
        cost_estimate=pl.CostEstimate(flops=int(flops),
                                      transcendentals=int(transcendentals),
                                      bytes_accessed=int(bytes_accessed)),
    )(*inputs)
    return out, (hn, cn)


def init_params(key, F, H, L, n_ff, S, O):
    """Deterministic synthetic parameter init (same shapes as the nn.Module)."""
    scale = 0.1
    keys = iter(jax.random.split(key, 4 * L + 2 * (n_ff - 1) + 2 + 4))

    lstm_params = []
    for l in range(L):
        in_dim = F if l == 0 else H
        w_ih = jax.random.normal(next(keys), (4 * H, in_dim), jnp.float32) * scale
        w_hh = jax.random.normal(next(keys), (4 * H, H), jnp.float32) * scale
        b_ih = jax.random.normal(next(keys), (4 * H,), jnp.float32) * scale
        b_hh = jax.random.normal(next(keys), (4 * H,), jnp.float32) * scale
        lstm_params.append((w_ih, w_hh, (b_ih + b_hh).reshape(1, 4 * H)))

    ff_params = []
    for i in range(n_ff - 1):
        in_dim = H + S if i == 0 else H
        w = jax.random.normal(next(keys), (H, in_dim), jnp.float32) * scale
        b = jax.random.normal(next(keys), (H,), jnp.float32) * scale
        ff_params.append((w, b))

    final_w = jax.random.normal(next(keys), (O, H), jnp.float32) * scale
    final_b = jax.random.normal(next(keys), (O,), jnp.float32) * scale
    return lstm_params, ff_params, final_w, final_b


def reference_forward(x, hidden, static, lstm_params, ff_params, final_w, final_b):
    """Pure-JAX reference matching torch semantics (eval mode)."""
    h, c = hidden
    h = [h[l] for l in range(h.shape[0])]
    c = [c[l] for l in range(c.shape[0])]
    B, T, _ = x.shape
    H = h[0].shape[1]
    inp = x.astype(jnp.float32)
    sig = jax.nn.sigmoid
    for l, (w_ih, w_hh, b) in enumerate(lstm_params):
        hl, cl = h[l], c[l]
        hs = []
        for t in range(T):
            xt = inp[:, t, :]
            gates = (jnp.dot(xt, w_ih.T, precision=lax.Precision.HIGHEST)
                     + jnp.dot(hl, w_hh.T, precision=lax.Precision.HIGHEST)
                     + b[0])
            i = sig(gates[:, :H]); f = sig(gates[:, H:2 * H])
            g = jnp.tanh(gates[:, 2 * H:3 * H]); o = sig(gates[:, 3 * H:4 * H])
            cl = f * cl + i * g
            hl = o * jnp.tanh(cl)
            hs.append(hl)
        inp = jnp.stack(hs, axis=1)
        h[l], c[l] = hl, cl
    out = jnp.concatenate([inp[:, -1, :], static], axis=1)
    for (w, b) in ff_params:
        out = jnp.dot(out, w.T, precision=lax.Precision.HIGHEST) + b
    out = jnp.dot(out, final_w.T, precision=lax.Precision.HIGHEST) + final_b
    return out, (jnp.stack(h), jnp.stack(c))


if __name__ == "__main__":
    # Small shapes consistent with the module's forward.
    B, T = 2, 8                 # batch, sequence length
    F = 6                       # num_input_features
    H = 32                      # hidden_dim
    L = 2                       # n_layers
    NFF = 3                     # ffnn_layers -> 2 intermediate Linear layers
    S = 4                       # static_dim
    O = 6                       # output_size

    key = jax.random.PRNGKey(0)
    kx, ks, kp = jax.random.split(key, 3)
    x = jax.random.normal(kx, (B, T, F), jnp.float32)
    static = jax.random.normal(ks, (B, S), jnp.float32)
    h0 = jnp.zeros((L, B, H), jnp.float32)   # init_hidden(batch_size)
    c0 = jnp.zeros((L, B, H), jnp.float32)

    lstm_params, ff_params, final_w, final_b = init_params(kp, F, H, L, NFF, S, O)

    out, (hn, cn) = drought_net_lstm_forward(
        x, (h0, c0), static, lstm_params, ff_params, final_w, final_b)
    jax.block_until_ready((out, hn, cn))

    ref_out, (ref_hn, ref_cn) = reference_forward(
        x, (h0, c0), static, lstm_params, ff_params, final_w, final_b)

    assert out.shape == (B, O) and hn.shape == (L, B, H) and cn.shape == (L, B, H)
    assert jnp.allclose(out, ref_out, atol=2e-3, rtol=2e-3)
    assert jnp.allclose(hn, ref_hn, atol=2e-3, rtol=2e-3)
    assert jnp.allclose(cn, ref_cn, atol=2e-3, rtol=2e-3)

    print("KERNEL_OK")
</pallas_src>

<mosaic_0001>
module attributes {stable_mosaic.version = 11 : i64} {
  func.func @kernel(%arg0: memref<16x6xf32, #tpu.memory_space<vmem>>, %arg1: memref<2x2x32xf32, #tpu.memory_space<vmem>>, %arg2: memref<2x2x32xf32, #tpu.memory_space<vmem>>, %arg3: memref<2x4xf32, #tpu.memory_space<vmem>>, %arg4: memref<248x128xf32, #tpu.memory_space<vmem>>, %arg5: memref<2x6xf32, #tpu.memory_space<vmem>>, %arg6: memref<2x2x32xf32, #tpu.memory_space<vmem>>, %arg7: memref<2x2x32xf32, #tpu.memory_space<vmem>>, %arg8: memref<16x32xf32, #tpu.memory_space<vmem>>) attributes {dimension_semantics = [], scalar_prefetch = 0 : i64, scratch_operands = 1 : i64, tpu.core_type = #tpu.core_type<tc>} {
    %c0 = arith.constant 0 : index
    %c0_0 = arith.constant 0 : index
    %0 = vector.load %arg0[%c0, %c0_0] : memref<16x6xf32, #tpu.memory_space<vmem>>, vector<16x6xf32>
    %c0_1 = arith.constant 0 : index
    %c0_2 = arith.constant 0 : index
    %1 = vector.load %arg4[%c0_1, %c0_2] : memref<248x128xf32, #tpu.memory_space<vmem>>, vector<8x128xf32>
    %2 = vector.extract_strided_slice %1 {offsets = [0, 0], sizes = [6, 128], strides = [1, 1]} : vector<8x128xf32> to vector<6x128xf32>
    %c8 = arith.constant 8 : index
    %c0_3 = arith.constant 0 : index
    %3 = vector.load %arg4[%c8, %c0_3] : memref<248x128xf32, #tpu.memory_space<vmem>>, vector<32x128xf32>
    %4 = arith.truncf %3 : vector<32x128xf32> to vector<32x128xbf16>
    %c40 = arith.constant 40 : index
    %c0_4 = arith.constant 0 : index
    %5 = vector.load %arg4[%c40, %c0_4] : memref<248x128xf32, #tpu.memory_space<vmem>>, vector<8x128xf32>
    %6 = vector.extract_strided_slice %5 {offsets = [0, 0], sizes = [1, 128], strides = [1, 1]} : vector<8x128xf32> to vector<1x128xf32>
    %cst = arith.constant dense<0.000000e+00> : vector<16x128xf32>
    %7 = tpu.matmul %0, %2, %cst {dimension_numbers = #tpu.dot_dimension_numbers<[1], [0], [0], [1], [0, 0, 1, 1], [], []>} : vector<16x6xf32>, vector<6x128xf32>, vector<16x128xf32> -> vector<16x128xf32>
    %8 = vector.broadcast %6 : vector<1x128xf32> to vector<16x128xf32>
    %9 = arith.addf %7, %8 : vector<16x128xf32>
    %c0_5 = arith.constant 0 : index
    %c0_6 = arith.constant 0 : index
    %c0_7 = arith.constant 0 : index
    %10 = vector.load %arg1[%c0_5, %c0_6, %c0_7] : memref<2x2x32xf32, #tpu.memory_space<vmem>>, vector<1x2x32xf32>
    %11 = vector.shape_cast %10 : vector<1x2x32xf32> to vector<2x32xf32>
    %c0_8 = arith.constant 0 : index
    %c0_9 = arith.constant 0 : index
    %c0_10 = arith.constant 0 : index
    %12 = vector.load %arg2[%c0_8, %c0_9, %c0_10] : memref<2x2x32xf32, #tpu.memory_space<vmem>>, vector<1x2x32xf32>
    %13 = vector.shape_cast %12 : vector<1x2x32xf32> to vector<2x32xf32>
    %14 = vector.extract_strided_slice %9 {offsets = [0, 0], sizes = [2, 128], strides = [1, 1]} : vector<16x128xf32> to vector<2x128xf32>
    %15 = arith.truncf %11 : vector<2x32xf32> to vector<2x32xbf16>
    %cst_11 = arith.constant dense<0.000000e+00> : vector<2x128xf32>
    %16 = tpu.matmul %15, %4, %cst_11 {dimension_numbers = #tpu.dot_dimension_numbers<[1], [0], [0], [1], [0, 0, 1, 1], [], []>} : vector<2x32xbf16>, vector<32x128xbf16>, vector<2x128xf32> -> vector<2x128xf32>
    %17 = arith.addf %14, %16 : vector<2x128xf32>
    %18 = arith.negf %17 : vector<2x128xf32>
    %19 = math.exp %18 : vector<2x128xf32>
    %cst_12 = arith.constant 1.000000e+00 : f32
    %20 = vector.broadcast %cst_12 : f32 to vector<2x128xf32>
    %21 = arith.addf %20, %19 : vector<2x128xf32>
    %22 = arith.divf %20, %21 : vector<2x128xf32>
    %23 = math.tanh %17 : vector<2x128xf32>
    %24 = vector.extract_strided_slice %22 {offsets = [0, 0], sizes = [2, 32], strides = [1, 1]} : vector<2x128xf32> to vector<2x32xf32>
    %25 = vector.extract_strided_slice %22 {offsets = [0, 32], sizes = [2, 32], strides = [1, 1]} : vector<2x128xf32> to vector<2x32xf32>
    %26 = vector.extract_strided_slice %23 {offsets = [0, 64], sizes = [2, 32], strides = [1, 1]} : vector<2x128xf32> to vector<2x32xf32>
    %27 = vector.extract_strided_slice %22 {offsets = [0, 96], sizes = [2, 32], strides = [1, 1]} : vector<2x128xf32> to vector<2x32xf32>
    %28 = arith.mulf %25, %13 : vector<2x32xf32>
    %29 = arith.mulf %24, %26 : vector<2x32xf32>
    %30 = arith.addf %28, %29 : vector<2x32xf32>
    %31 = math.tanh %30 : vector<2x32xf32>
    %32 = arith.mulf %27, %31 : vector<2x32xf32>
    %c0_13 = arith.constant 0 : index
    %c0_14 = arith.constant 0 : index
    %33 = vector.load %arg8[%c0_13, %c0_14] : memref<16x32xf32, #tpu.memory_space<vmem>>, vector<2x32xf32>
    tpu.vector_store %arg8[%c0_13, %c0_14], %32 {strides = array<i32>} : memref<16x32xf32, #tpu.memory_space<vmem>>, vector<2x32xf32>,
    %34 = vector.extract_strided_slice %9 {offsets = [2, 0], sizes = [2, 128], strides = [1, 1]} : vector<16x128xf32> to vector<2x128xf32>
    %35 = arith.truncf %32 : vector<2x32xf32> to vector<2x32xbf16>
    %cst_15 = arith.constant dense<0.000000e+00> : vector<2x128xf32>
    %36 = tpu.matmul %35, %4, %cst_15 {dimension_numbers = #tpu.dot_dimension_numbers<[1], [0], [0], [1], [0, 0, 1, 1], [], []>} : vector<2x32xbf16>, vector<32x128xbf16>, vector<2x128xf32> -> vector<2x128xf32>
    %37 = arith.addf %34, %36 : vector<2x128xf32>
    %38 = arith.negf %37 : vector<2x128xf32>
    %39 = math.exp %38 : vector<2x128xf32>
    %cst_16 = arith.constant 1.000000e+00 : f32
    %40 = vector.broadcast %cst_16 : f32 to vector<2x128xf32>
    %41 = arith.addf %40, %39 : vector<2x128xf32>
    %42 = arith.divf %40, %41 : vector<2x128xf32>
    %43 = math.tanh %37 : vector<2x128xf32>
    %44 = vector.extract_strided_slice %42 {offsets = [0, 0], sizes = [2, 32], strides = [1, 1]} : vector<2x128xf32> to vector<2x32xf32>
    %45 = vector.extract_strided_slice %42 {offsets = [0, 32], sizes = [2, 32], strides = [1, 1]} : vector<2x128xf32> to vector<2x32xf32>
    %46 = vector.extract_strided_slice %43 {offsets = [0, 64], sizes = [2, 32], strides = [1, 1]} : vector<2x128xf32> to vector<2x32xf32>
    %47 = vector.extract_strided_slice %42 {offsets = [0, 96], sizes = [2, 32], strides = [1, 1]} : vector<2x128xf32> to vector<2x32xf32>
    %48 = arith.mulf %45, %30 : vector<2x32xf32>
    %49 = arith.mulf %44, %46 : vector<2x32xf32>
    %50 = arith.addf %48, %49 : vector<2x32xf32>
    %51 = math.tanh %50 : vector<2x32xf32>
    %52 = arith.mulf %47, %51 : vector<2x32xf32>
    %c2 = arith.constant 2 : index
    %c0_17 = arith.constant 0 : index
    %53 = vector.load %arg8[%c2, %c0_17] : memref<16x32xf32, #tpu.memory_space<vmem>>, vector<2x32xf32>
    tpu.vector_store %arg8[%c2, %c0_17], %52 {strides = array<i32>} : memref<16x32xf32, #tpu.memory_space<vmem>>, vector<2x32xf32>,
    %54 = vector.extract_strided_slice %9 {offsets = [4, 0], sizes = [2, 128], strides = [1, 1]} : vector<16x128xf32> to vector<2x128xf32>
    %55 = arith.truncf %52 : vector<2x32xf32> to vector<2x32xbf16>
    %cst_18 = arith.constant dense<0.000000e+00> : vector<2x128xf32>
    %56 = tpu.matmul %55, %4, %cst_18 {dimension_numbers = #tpu.dot_dimension_numbers<[1], [0], [0], [1], [0, 0, 1, 1], [], []>} : vector<2x32xbf16>, vector<32x128xbf16>, vector<2x128xf32> -> vector<2x128xf32>
    %57 = arith.addf %54, %56 : vector<2x128xf32>
    %58 = arith.negf %57 : vector<2x128xf32>
    %59 = math.exp %58 : vector<2x128xf32>
    %cst_19 = arith.constant 1.000000e+00 : f32
    %60 = vector.broadcast %cst_19 : f32 to vector<2x128xf32>
    %61 = arith.addf %60, %59 : vector<2x128xf32>
    %62 = arith.divf %60, %61 : vector<2x128xf32>
    %63 = math.tanh %57 : vector<2x128xf32>
    %64 = vector.extract_strided_slice %62 {offsets = [0, 0], sizes = [2, 32], strides = [1, 1]} : vector<2x128xf32> to vector<2x32xf32>
    %65 = vector.extract_strided_slice %62 {offsets = [0, 32], sizes = [2, 32], strides = [1, 1]} : vector<2x128xf32> to vector<2x32xf32>
    %66 = vector.extract_strided_slice %63 {offsets = [0, 64], sizes = [2, 32], strides = [1, 1]} : vector<2x128xf32> to vector<2x32xf32>
    %67 = vector.extract_strided_slice %62 {offsets = [0, 96], sizes = [2, 32], strides = [1, 1]} : vector<2x128xf32> to vector<2x32xf32>
    %68 = arith.mulf %65, %50 : vector<2x32xf32>
    %69 = arith.mulf %64, %66 : vector<2x32xf32>
    %70 = arith.addf %68, %69 : vector<2x32xf32>
    %71 = math.tanh %70 : vector<2x32xf32>
    %72 = arith.mulf %67, %71 : vector<2x32xf32>
    %c4 = arith.constant 4 : index
    %c0_20 = arith.constant 0 : index
    %73 = vector.load %arg8[%c4, %c0_20] : memref<16x32xf32, #tpu.memory_space<vmem>>, vector<2x32xf32>
    tpu.vector_store %arg8[%c4, %c0_20], %72 {strides = array<i32>} : memref<16x32xf32, #tpu.memory_space<vmem>>, vector<2x32xf32>,
    %74 = vector.extract_strided_slice %9 {offsets = [6, 0], sizes = [2, 128], strides = [1, 1]} : vector<16x128xf32> to vector<2x128xf32>
    %75 = arith.truncf %72 : vector<2x32xf32> to vector<2x32xbf16>
    %cst_21 = arith.constant dense<0.000000e+00> : vector<2x128xf32>
    %76 = tpu.matmul %75, %4, %cst_21 {dimension_numbers = #tpu.dot_dimension_numbers<[1], [0], [0], [1], [0, 0, 1, 1], [], []>} : vector<2x32xbf16>, vector<32x128xbf16>, vector<2x128xf32> -> vector<2x128xf32>
    %77 = arith.addf %74, %76 : vector<2x128xf32>
    %78 = arith.negf %77 : vector<2x128xf32>
    %79 = math.exp %78 : vector<2x128xf32>
    %cst_22 = arith.constant 1.000000e+00 : f32
    %80 = vector.broadcast %cst_22 : f32 to vector<2x128xf32>
    %81 = arith.addf %80, %79 : vector<2x128xf32>
    %82 = arith.divf %80, %81 : vector<2x128xf32>
    %83 = math.tanh %77 : vector<2x128xf32>
    %84 = vector.extract_strided_slice %82 {offsets = [0, 0], sizes = [2, 32], strides = [1, 1]} : vector<2x128xf32> to vector<2x32xf32>
    %85 = vector.extract_strided_slice %82 {offsets = [0, 32], sizes = [2, 32], strides = [1, 1]} : vector<2x128xf32> to vector<2x32xf32>
    %86 = vector.extract_strided_slice %83 {offsets = [0, 64], sizes = [2, 32], strides = [1, 1]} : vector<2x128xf32> to vector<2x32xf32>
    %87 = vector.extract_strided_slice %82 {offsets = [0, 96], sizes = [2, 32], strides = [1, 1]} : vector<2x128xf32> to vector<2x32xf32>
    %88 = arith.mulf %85, %70 : vector<2x32xf32>
    %89 = arith.mulf %84, %86 : vector<2x32xf32>
    %90 = arith.addf %88, %89 : vector<2x32xf32>
    %91 = math.tanh %90 : vector<2x32xf32>
    %92 = arith.mulf %87, %91 : vector<2x32xf32>
    %c6 = arith.constant 6 : index
    %c0_23 = arith.constant 0 : index
    %93 = vector.load %arg8[%c6, %c0_23] : memref<16x32xf32, #tpu.memory_space<vmem>>, vector<2x32xf32>
    tpu.vector_store %arg8[%c6, %c0_23], %92 {strides = array<i32>} : memref<16x32xf32, #tpu.memory_space<vmem>>, vector<2x32xf32>,
    %94 = vector.extract_strided_slice %9 {offsets = [8, 0], sizes = [2, 128], strides = [1, 1]} : vector<16x128xf32> to vector<2x128xf32>
    %95 = arith.truncf %92 : vector<2x32xf32> to vector<2x32xbf16>
    %cst_24 = arith.constant dense<0.000000e+00> : vector<2x128xf32>
    %96 = tpu.matmul %95, %4, %cst_24 {dimension_numbers = #tpu.dot_dimension_numbers<[1], [0], [0], [1], [0, 0, 1, 1], [], []>} : vector<2x32xbf16>, vector<32x128xbf16>, vector<2x128xf32> -> vector<2x128xf32>
    %97 = arith.addf %94, %96 : vector<2x128xf32>
    %98 = arith.negf %97 : vector<2x128xf32>
    %99 = math.exp %98 : vector<2x128xf32>
    %cst_25 = arith.constant 1.000000e+00 : f32
    %100 = vector.broadcast %cst_25 : f32 to vector<2x128xf32>
    %101 = arith.addf %100, %99 : vector<2x128xf32>
    %102 = arith.divf %100, %101 : vector<2x128xf32>
    %103 = math.tanh %97 : vector<2x128xf32>
    %104 = vector.extract_strided_slice %102 {offsets = [0, 0], sizes = [2, 32], strides = [1, 1]} : vector<2x128xf32> to vector<2x32xf32>
    %105 = vector.extract_strided_slice %102 {offsets = [0, 32], sizes = [2, 32], strides = [1, 1]} : vector<2x128xf32> to vector<2x32xf32>
    %106 = vector.extract_strided_slice %103 {offsets = [0, 64], sizes = [2, 32], strides = [1, 1]} : vector<2x128xf32> to vector<2x32xf32>
    %107 = vector.extract_strided_slice %102 {offsets = [0, 96], sizes = [2, 32], strides = [1, 1]} : vector<2x128xf32> to vector<2x32xf32>
    %108 = arith.mulf %105, %90 : vector<2x32xf32>
    %109 = arith.mulf %104, %106 : vector<2x32xf32>
    %110 = arith.addf %108, %109 : vector<2x32xf32>
    %111 = math.tanh %110 : vector<2x32xf32>
    %112 = arith.mulf %107, %111 : vector<2x32xf32>
    %c8_26 = arith.constant 8 : index
    %c0_27 = arith.constant 0 : index
    %113 = vector.load %arg8[%c8_26, %c0_27] : memref<16x32xf32, #tpu.memory_space<vmem>>, vector<2x32xf32>
    tpu.vector_store %arg8[%c8_26, %c0_27], %112 {strides = array<i32>} : memref<16x32xf32, #tpu.memory_space<vmem>>, vector<2x32xf32>,
    %114 = vector.extract_strided_slice %9 {offsets = [10, 0], sizes = [2, 128], strides = [1, 1]} : vector<16x128xf32> to vector<2x128xf32>
    %115 = arith.truncf %112 : vector<2x32xf32> to vector<2x32xbf16>
    %cst_28 = arith.constant dense<0.000000e+00> : vector<2x128xf32>
    %116 = tpu.matmul %115, %4, %cst_28 {dimension_numbers = #tpu.dot_dimension_numbers<[1], [0], [0], [1], [0, 0, 1, 1], [], []>} : vector<2x32xbf16>, vector<32x128xbf16>, vector<2x128xf32> -> vector<2x128xf32>
    %117 = arith.addf %114, %116 : vector<2x128xf32>
    %118 = arith.negf %117 : vector<2x128xf32>
    %119 = math.exp %118 : vector<2x128xf32>
    %cst_29 = arith.constant 1.000000e+00 : f32
    %120 = vector.broadcast %cst_29 : f32 to vector<2x128xf32>
    %121 = arith.addf %120, %119 : vector<2x128xf32>
    %122 = arith.divf %120, %121 : vector<2x128xf32>
    %123 = math.tanh %117 : vector<2x128xf32>
    %124 = vector.extract_strided_slice %122 {offsets = [0, 0], sizes = [2, 32], strides = [1, 1]} : vector<2x128xf32> to vector<2x32xf32>
    %125 = vector.extract_strided_slice %122 {offsets = [0, 32], sizes = [2, 32], strides = [1, 1]} : vector<2x128xf32> to vector<2x32xf32>
    %126 = vector.extract_strided_slice %123 {offsets = [0, 64], sizes = [2, 32], strides = [1, 1]} : vector<2x128xf32> to vector<2x32xf32>
    %127 = vector.extract_strided_slice %122 {offsets = [0, 96], sizes = [2, 32], strides = [1, 1]} : vector<2x128xf32> to vector<2x32xf32>
    %128 = arith.mulf %125, %110 : vector<2x32xf32>
    %129 = arith.mulf %124, %126 : vector<2x32xf32>
    %130 = arith.addf %128, %129 : vector<2x32xf32>
    %131 = math.tanh %130 : vector<2x32xf32>
    %132 = arith.mulf %127, %131 : vector<2x32xf32>
    %c10 = arith.constant 10 : index
    %c0_30 = arith.constant 0 : index
    %133 = vector.load %arg8[%c10, %c0_30] : memref<16x32xf32, #tpu.memory_space<vmem>>, vector<2x32xf32>
    tpu.vector_store %arg8[%c10, %c0_30], %132 {strides = array<i32>} : memref<16x32xf32, #tpu.memory_space<vmem>>, vector<2x32xf32>,
    %134 = vector.extract_strided_slice %9 {offsets = [12, 0], sizes = [2, 128], strides = [1, 1]} : vector<16x128xf32> to vector<2x128xf32>
    %135 = arith.truncf %132 : vector<2x32xf32> to vector<2x32xbf16>
    %cst_31 = arith.constant dense<0.000000e+00> : vector<2x128xf32>
    %136 = tpu.matmul %135, %4, %cst_31 {dimension_numbers = #tpu.dot_dimension_numbers<[1], [0], [0], [1], [0, 0, 1, 1], [], []>} : vector<2x32xbf16>, vector<32x128xbf16>, vector<2x128xf32> -> vector<2x128xf32>
    %137 = arith.addf %134, %136 : vector<2x128xf32>
    %138 = arith.negf %137 : vector<2x128xf32>
    %139 = math.exp %138 : vector<2x128xf32>
    %cst_32 = arith.constant 1.000000e+00 : f32
    %140 = vector.broadcast %cst_32 : f32 to vector<2x128xf32>
    %141 = arith.addf %140, %139 : vector<2x128xf32>
    %142 = arith.divf %140, %141 : vector<2x128xf32>
    %143 = math.tanh %137 : vector<2x128xf32>
    %144 = vector.extract_strided_slice %142 {offsets = [0, 0], sizes = [2, 32], strides = [1, 1]} : vector<2x128xf32> to vector<2x32xf32>
    %145 = vector.extract_strided_slice %142 {offsets = [0, 32], sizes = [2, 32], strides = [1, 1]} : vector<2x128xf32> to vector<2x32xf32>
    %146 = vector.extract_strided_slice %143 {offsets = [0, 64], sizes = [2, 32], strides = [1, 1]} : vector<2x128xf32> to vector<2x32xf32>
    %147 = vector.extract_strided_slice %142 {offsets = [0, 96], sizes = [2, 32], strides = [1, 1]} : vector<2x128xf32> to vector<2x32xf32>
    %148 = arith.mulf %145, %130 : vector<2x32xf32>
    %149 = arith.mulf %144, %146 : vector<2x32xf32>
    %150 = arith.addf %148, %149 : vector<2x32xf32>
    %151 = math.tanh %150 : vector<2x32xf32>
    %152 = arith.mulf %147, %151 : vector<2x32xf32>
    %c12 = arith.constant 12 : index
    %c0_33 = arith.constant 0 : index
    %153 = vector.load %arg8[%c12, %c0_33] : memref<16x32xf32, #tpu.memory_space<vmem>>, vector<2x32xf32>
    tpu.vector_store %arg8[%c12, %c0_33], %152 {strides = array<i32>} : memref<16x32xf32, #tpu.memory_space<vmem>>, vector<2x32xf32>,
    %154 = vector.extract_strided_slice %9 {offsets = [14, 0], sizes = [2, 128], strides = [1, 1]} : vector<16x128xf32> to vector<2x128xf32>
    %155 = arith.truncf %152 : vector<2x32xf32> to vector<2x32xbf16>
    %cst_34 = arith.constant dense<0.000000e+00> : vector<2x128xf32>
    %156 = tpu.matmul %155, %4, %cst_34 {dimension_numbers = #tpu.dot_dimension_numbers<[1], [0], [0], [1], [0, 0, 1, 1], [], []>} : vector<2x32xbf16>, vector<32x128xbf16>, vector<2x128xf32> -> vector<2x128xf32>
    %157 = arith.addf %154, %156 : vector<2x128xf32>
    %158 = arith.negf %157 : vector<2x128xf32>
    %159 = math.exp %158 : vector<2x128xf32>
    %cst_35 = arith.constant 1.000000e+00 : f32
    %160 = vector.broadcast %cst_35 : f32 to vector<2x128xf32>
    %161 = arith.addf %160, %159 : vector<2x128xf32>
    %162 = arith.divf %160, %161 : vector<2x128xf32>
    %163 = math.tanh %157 : vector<2x128xf32>
    %164 = vector.extract_strided_slice %162 {offsets = [0, 0], sizes = [2, 32], strides = [1, 1]} : vector<2x128xf32> to vector<2x32xf32>
    %165 = vector.extract_strided_slice %162 {offsets = [0, 32], sizes = [2, 32], strides = [1, 1]} : vector<2x128xf32> to vector<2x32xf32>
    %166 = vector.extract_strided_slice %163 {offsets = [0, 64], sizes = [2, 32], strides = [1, 1]} : vector<2x128xf32> to vector<2x32xf32>
    %167 = vector.extract_strided_slice %162 {offsets = [0, 96], sizes = [2, 32], strides = [1, 1]} : vector<2x128xf32> to vector<2x32xf32>
    %168 = arith.mulf %165, %150 : vector<2x32xf32>
    %169 = arith.mulf %164, %166 : vector<2x32xf32>
    %170 = arith.addf %168, %169 : vector<2x32xf32>
    %171 = math.tanh %170 : vector<2x32xf32>
    %172 = arith.mulf %167, %171 : vector<2x32xf32>
    %c14 = arith.constant 14 : index
    %c0_36 = arith.constant 0 : index
    %173 = vector.load %arg8[%c14, %c0_36] : memref<16x32xf32, #tpu.memory_space<vmem>>, vector<2x32xf32>
    tpu.vector_store %arg8[%c14, %c0_36], %172 {strides = array<i32>} : memref<16x32xf32, #tpu.memory_space<vmem>>, vector<2x32xf32>,
    %c0_37 = arith.constant 0 : index
    %c0_38 = arith.constant 0 : index
    %c0_39 = arith.constant 0 : index
    %174 = vector.load %arg6[%c0_37, %c0_38, %c0_39] : memref<2x2x32xf32, #tpu.memory_space<vmem>>, vector<1x2x32xf32>
    %175 = vector.shape_cast %174 : vector<1x2x32xf32> to vector<2x32xf32>
    %176 = vector.shape_cast %172 : vector<2x32xf32> to vector<1x2x32xf32>
    tpu.vector_store %arg6[%c0_37, %c0_38, %c0_39], %176 {strides = array<i32>} : memref<2x2x32xf32, #tpu.memory_space<vmem>>, vector<1x2x32xf32>,
    %c0_40 = arith.constant 0 : index
    %c0_41 = arith.constant 0 : index
    %c0_42 = arith.constant 0 : index
    %177 = vector.load %arg7[%c0_40, %c0_41, %c0_42] : memref<2x2x32xf32, #tpu.memory_space<vmem>>, vector<1x2x32xf32>
    %178 = vector.shape_cast %177 : vector<1x2x32xf32> to vector<2x32xf32>
    %179 = vector.shape_cast %170 : vector<2x32xf32> to vector<1x2x32xf32>
    tpu.vector_store %arg7[%c0_40, %c0_41, %c0_42], %179 {strides = array<i32>} : memref<2x2x32xf32, #tpu.memory_space<vmem>>, vector<1x2x32xf32>,
    %c0_43 = arith.constant 0 : index
    %c0_44 = arith.constant 0 : index
    %180 = vector.load %arg8[%c0_43, %c0_44] : memref<16x32xf32, #tpu.memory_space<vmem>>, vector<16x32xf32>
    %c48 = arith.constant 48 : index
    %c0_45 = arith.constant 0 : index
    %181 = vector.load %arg4[%c48, %c0_45] : memref<248x128xf32, #tpu.memory_space<vmem>>, vector<32x128xf32>
    %c80 = arith.constant 80 : index
    %c0_46 = arith.constant 0 : index
    %182 = vector.load %arg4[%c80, %c0_46] : memref<248x128xf32, #tpu.memory_space<vmem>>, vector<32x128xf32>
    %183 = arith.truncf %182 : vector<32x128xf32> to vector<32x128xbf16>
    %c112 = arith.constant 112 : index
    %c0_47 = arith.constant 0 : index
    %184 = vector.load %arg4[%c112, %c0_47] : memref<248x128xf32, #tpu.memory_space<vmem>>, vector<8x128xf32>
    %185 = vector.extract_strided_slice %184 {offsets = [0, 0], sizes = [1, 128], strides = [1, 1]} : vector<8x128xf32> to vector<1x128xf32>
    %cst_48 = arith.constant dense<0.000000e+00> : vector<16x128xf32>
    %186 = tpu.matmul %180, %181, %cst_48 {dimension_numbers = #tpu.dot_dimension_numbers<[1], [0], [0], [1], [0, 0, 1, 1], [], []>} : vector<16x32xf32>, vector<32x128xf32>, vector<16x128xf32> -> vector<16x128xf32>
    %187 = vector.broadcast %185 : vector<1x128xf32> to vector<16x128xf32>
    %188 = arith.addf %186, %187 : vector<16x128xf32>
    %c1 = arith.constant 1 : index
    %c0_49 = arith.constant 0 : index
    %c0_50 = arith.constant 0 : index
    %189 = vector.load %arg1[%c1, %c0_49, %c0_50] : memref<2x2x32xf32, #tpu.memory_space<vmem>>, vector<1x2x32xf32>
    %190 = vector.shape_cast %189 : vector<1x2x32xf32> to vector<2x32xf32>
    %c1_51 = arith.constant 1 : index
    %c0_52 = arith.constant 0 : index
    %c0_53 = arith.constant 0 : index
    %191 = vector.load %arg2[%c1_51, %c0_52, %c0_53] : memref<2x2x32xf32, #tpu.memory_space<vmem>>, vector<1x2x32xf32>
    %192 = vector.shape_cast %191 : vector<1x2x32xf32> to vector<2x32xf32>
    %193 = vector.extract_strided_slice %188 {offsets = [0, 0], sizes = [2, 128], strides = [1, 1]} : vector<16x128xf32> to vector<2x128xf32>
    %194 = arith.truncf %190 : vector<2x32xf32> to vector<2x32xbf16>
    %cst_54 = arith.constant dense<0.000000e+00> : vector<2x128xf32>
    %195 = tpu.matmul %194, %183, %cst_54 {dimension_numbers = #tpu.dot_dimension_numbers<[1], [0], [0], [1], [0, 0, 1, 1], [], []>} : vector<2x32xbf16>, vector<32x128xbf16>, vector<2x128xf32> -> vector<2x128xf32>
    %196 = arith.addf %193, %195 : vector<2x128xf32>
    %197 = arith.negf %196 : vector<2x128xf32>
    %198 = math.exp %197 : vector<2x128xf32>
    %cst_55 = arith.constant 1.000000e+00 : f32
    %199 = vector.broadcast %cst_55 : f32 to vector<2x128xf32>
    %200 = arith.addf %199, %198 : vector<2x128xf32>
    %201 = arith.divf %199, %200 : vector<2x128xf32>
    %202 = math.tanh %196 : vector<2x128xf32>
    %203 = vector.extract_strided_slice %201 {offsets = [0, 0], sizes = [2, 32], strides = [1, 1]} : vector<2x128xf32> to vector<2x32xf32>
    %204 = vector.extract_strided_slice %201 {offsets = [0, 32], sizes = [2, 32], strides = [1, 1]} : vector<2x128xf32> to vector<2x32xf32>
    %205 = vector.extract_strided_slice %202 {offsets = [0, 64], sizes = [2, 32], strides = [1, 1]} : vector<2x128xf32> to vector<2x32xf32>
    %206 = vector.extract_strided_slice %201 {offsets = [0, 96], sizes = [2, 32], strides = [1, 1]} : vector<2x128xf32> to vector<2x32xf32>
    %207 = arith.mulf %204, %192 : vector<2x32xf32>
    %208 = arith.mulf %203, %205 : vector<2x32xf32>
    %209 = arith.addf %207, %208 : vector<2x32xf32>
    %210 = math.tanh %209 : vector<2x32xf32>
    %211 = arith.mulf %206, %210 : vector<2x32xf32>
    %212 = vector.extract_strided_slice %188 {offsets = [2, 0], sizes = [2, 128], strides = [1, 1]} : vector<16x128xf32> to vector<2x128xf32>
    %213 = arith.truncf %211 : vector<2x32xf32> to vector<2x32xbf16>
    %cst_56 = arith.constant dense<0.000000e+00> : vector<2x128xf32>
    %214 = tpu.matmul %213, %183, %cst_56 {dimension_numbers = #tpu.dot_dimension_numbers<[1], [0], [0], [1], [0, 0, 1, 1], [], []>} : vector<2x32xbf16>, vector<32x128xbf16>, vector<2x128xf32> -> vector<2x128xf32>
    %215 = arith.addf %212, %214 : vector<2x128xf32>
    %216 = arith.negf %215 : vector<2x128xf32>
    %217 = math.exp %216 : vector<2x128xf32>
    %cst_57 = arith.constant 1.000000e+00 : f32
    %218 = vector.broadcast %cst_57 : f32 to vector<2x128xf32>
    %219 = arith.addf %218, %217 : vector<2x128xf32>
    %220 = arith.divf %218, %219 : vector<2x128xf32>
    %221 = math.tanh %215 : vector<2x128xf32>
    %222 = vector.extract_strided_slice %220 {offsets = [0, 0], sizes = [2, 32], strides = [1, 1]} : vector<2x128xf32> to vector<2x32xf32>
    %223 = vector.extract_strided_slice %220 {offsets = [0, 32], sizes = [2, 32], strides = [1, 1]} : vector<2x128xf32> to vector<2x32xf32>
    %224 = vector.extract_strided_slice %221 {offsets = [0, 64], sizes = [2, 32], strides = [1, 1]} : vector<2x128xf32> to vector<2x32xf32>
    %225 = vector.extract_strided_slice %220 {offsets = [0, 96], sizes = [2, 32], strides = [1, 1]} : vector<2x128xf32> to vector<2x32xf32>
    %226 = arith.mulf %223, %209 : vector<2x32xf32>
    %227 = arith.mulf %222, %224 : vector<2x32xf32>
    %228 = arith.addf %226, %227 : vector<2x32xf32>
    %229 = math.tanh %228 : vector<2x32xf32>
    %230 = arith.mulf %225, %229 : vector<2x32xf32>
    %231 = vector.extract_strided_slice %188 {offsets = [4, 0], sizes = [2, 128], strides = [1, 1]} : vector<16x128xf32> to vector<2x128xf32>
    %232 = arith.truncf %230 : vector<2x32xf32> to vector<2x32xbf16>
    %cst_58 = arith.constant dense<0.000000e+00> : vector<2x128xf32>
    %233 = tpu.matmul %232, %183, %cst_58 {dimension_numbers = #tpu.dot_dimension_numbers<[1], [0], [0], [1], [0, 0, 1, 1], [], []>} : vector<2x32xbf16>, vector<32x128xbf16>, vector<2x128xf32> -> vector<2x128xf32>
    %234 = arith.addf %231, %233 : vector<2x128xf32>
    %235 = arith.negf %234 : vector<2x128xf32>
    %236 = math.exp %235 : vector<2x128xf32>
    %cst_59 = arith.constant 1.000000e+00 : f32
    %237 = vector.broadcast %cst_59 : f32 to vector<2x128xf32>
    %238 = arith.addf %237, %236 : vector<2x128xf32>
    %239 = arith.divf %237, %238 : vector<2x128xf32>
    %240 = math.tanh %234 : vector<2x128xf32>
    %241 = vector.extract_strided_slice %239 {offsets = [0, 0], sizes = [2, 32], strides = [1, 1]} : vector<2x128xf32> to vector<2x32xf32>
    %242 = vector.extract_strided_slice %239 {offsets = [0, 32], sizes = [2, 32], strides = [1, 1]} : vector<2x128xf32> to vector<2x32xf32>
    %243 = vector.extract_strided_slice %240 {offsets = [0, 64], sizes = [2, 32], strides = [1, 1]} : vector<2x128xf32> to vector<2x32xf32>
    %244 = vector.extract_strided_slice %239 {offsets = [0, 96], sizes = [2, 32], strides = [1, 1]} : vector<2x128xf32> to vector<2x32xf32>
    %245 = arith.mulf %242, %228 : vector<2x32xf32>
    %246 = arith.mulf %241, %243 : vector<2x32xf32>
    %247 = arith.addf %245, %246 : vector<2x32xf32>
    %248 = math.tanh %247 : vector<2x32xf32>
    %249 = arith.mulf %244, %248 : vector<2x32xf32>
    %250 = vector.extract_strided_slice %188 {offsets = [6, 0], sizes = [2, 128], strides = [1, 1]} : vector<16x128xf32> to vector<2x128xf32>
    %251 = arith.truncf %249 : vector<2x32xf32> to vector<2x32xbf16>
    %cst_60 = arith.constant dense<0.000000e+00> : vector<2x128xf32>
    %252 = tpu.matmul %251, %183, %cst_60 {dimension_numbers = #tpu.dot_dimension_numbers<[1], [0], [0], [1], [0, 0, 1, 1], [], []>} : vector<2x32xbf16>, vector<32x128xbf16>, vector<2x128xf32> -> vector<2x128xf32>
    %253 = arith.addf %250, %252 : vector<2x128xf32>
    %254 = arith.negf %253 : vector<2x128xf32>
    %255 = math.exp %254 : vector<2x128xf32>
    %cst_61 = arith.constant 1.000000e+00 : f32
    %256 = vector.broadcast %cst_61 : f32 to vector<2x128xf32>
    %257 = arith.addf %256, %255 : vector<2x128xf32>
    %258 = arith.divf %256, %257 : vector<2x128xf32>
    %259 = math.tanh %253 : vector<2x128xf32>
    %260 = vector.extract_strided_slice %258 {offsets = [0, 0], sizes = [2, 32], strides = [1, 1]} : vector<2x128xf32> to vector<2x32xf32>
    %261 = vector.extract_strided_slice %258 {offsets = [0, 32], sizes = [2, 32], strides = [1, 1]} : vector<2x128xf32> to vector<2x32xf32>
    %262 = vector.extract_strided_slice %259 {offsets = [0, 64], sizes = [2, 32], strides = [1, 1]} : vector<2x128xf32> to vector<2x32xf32>
    %263 = vector.extract_strided_slice %258 {offsets = [0, 96], sizes = [2, 32], strides = [1, 1]} : vector<2x128xf32> to vector<2x32xf32>
    %264 = arith.mulf %261, %247 : vector<2x32xf32>
    %265 = arith.mulf %260, %262 : vector<2x32xf32>
    %266 = arith.addf %264, %265 : vector<2x32xf32>
    %267 = math.tanh %266 : vector<2x32xf32>
    %268 = arith.mulf %263, %267 : vector<2x32xf32>
    %269 = vector.extract_strided_slice %188 {offsets = [8, 0], sizes = [2, 128], strides = [1, 1]} : vector<16x128xf32> to vector<2x128xf32>
    %270 = arith.truncf %268 : vector<2x32xf32> to vector<2x32xbf16>
    %cst_62 = arith.constant dense<0.000000e+00> : vector<2x128xf32>
    %271 = tpu.matmul %270, %183, %cst_62 {dimension_numbers = #tpu.dot_dimension_numbers<[1], [0], [0], [1], [0, 0, 1, 1], [], []>} : vector<2x32xbf16>, vector<32x128xbf16>, vector<2x128xf32> -> vector<2x128xf32>
    %272 = arith.addf %269, %271 : vector<2x128xf32>
    %273 = arith.negf %272 : vector<2x128xf32>
    %274 = math.exp %273 : vector<2x128xf32>
    %cst_63 = arith.constant 1.000000e+00 : f32
    %275 = vector.broadcast %cst_63 : f32 to vector<2x128xf32>
    %276 = arith.addf %275, %274 : vector<2x128xf32>
    %277 = arith.divf %275, %276 : vector<2x128xf32>
    %278 = math.tanh %272 : vector<2x128xf32>
    %279 = vector.extract_strided_slice %277 {offsets = [0, 0], sizes = [2, 32], strides = [1, 1]} : vector<2x128xf32> to vector<2x32xf32>
    %280 = vector.extract_strided_slice %277 {offsets = [0, 32], sizes = [2, 32], strides = [1, 1]} : vector<2x128xf32> to vector<2x32xf32>
    %281 = vector.extract_strided_slice %278 {offsets = [0, 64], sizes = [2, 32], strides = [1, 1]} : vector<2x128xf32> to vector<2x32xf32>
    %282 = vector.extract_strided_slice %277 {offsets = [0, 96], sizes = [2, 32], strides = [1, 1]} : vector<2x128xf32> to vector<2x32xf32>
    %283 = arith.mulf %280, %266 : vector<2x32xf32>
    %284 = arith.mulf %279, %281 : vector<2x32xf32>
    %285 = arith.addf %283, %284 : vector<2x32xf32>
    %286 = math.tanh %285 : vector<2x32xf32>
    %287 = arith.mulf %282, %286 : vector<2x32xf32>
    %288 = vector.extract_strided_slice %188 {offsets = [10, 0], sizes = [2, 128], strides = [1, 1]} : vector<16x128xf32> to vector<2x128xf32>
    %289 = arith.truncf %287 : vector<2x32xf32> to vector<2x32xbf16>
    %cst_64 = arith.constant dense<0.000000e+00> : vector<2x128xf32>
    %290 = tpu.matmul %289, %183, %cst_64 {dimension_numbers = #tpu.dot_dimension_numbers<[1], [0], [0], [1], [0, 0, 1, 1], [], []>} : vector<2x32xbf16>, vector<32x128xbf16>, vector<2x128xf32> -> vector<2x128xf32>
    %291 = arith.addf %288, %290 : vector<2x128xf32>
    %292 = arith.negf %291 : vector<2x128xf32>
    %293 = math.exp %292 : vector<2x128xf32>
    %cst_65 = arith.constant 1.000000e+00 : f32
    %294 = vector.broadcast %cst_65 : f32 to vector<2x128xf32>
    %295 = arith.addf %294, %293 : vector<2x128xf32>
    %296 = arith.divf %294, %295 : vector<2x128xf32>
    %297 = math.tanh %291 : vector<2x128xf32>
    %298 = vector.extract_strided_slice %296 {offsets = [0, 0], sizes = [2, 32], strides = [1, 1]} : vector<2x128xf32> to vector<2x32xf32>
    %299 = vector.extract_strided_slice %296 {offsets = [0, 32], sizes = [2, 32], strides = [1, 1]} : vector<2x128xf32> to vector<2x32xf32>
    %300 = vector.extract_strided_slice %297 {offsets = [0, 64], sizes = [2, 32], strides = [1, 1]} : vector<2x128xf32> to vector<2x32xf32>
    %301 = vector.extract_strided_slice %296 {offsets = [0, 96], sizes = [2, 32], strides = [1, 1]} : vector<2x128xf32> to vector<2x32xf32>
    %302 = arith.mulf %299, %285 : vector<2x32xf32>
    %303 = arith.mulf %298, %300 : vector<2x32xf32>
    %304 = arith.addf %302, %303 : vector<2x32xf32>
    %305 = math.tanh %304 : vector<2x32xf32>
    %306 = arith.mulf %301, %305 : vector<2x32xf32>
    %307 = vector.extract_strided_slice %188 {offsets = [12, 0], sizes = [2, 128], strides = [1, 1]} : vector<16x128xf32> to vector<2x128xf32>
    %308 = arith.truncf %306 : vector<2x32xf32> to vector<2x32xbf16>
    %cst_66 = arith.constant dense<0.000000e+00> : vector<2x128xf32>
    %309 = tpu.matmul %308, %183, %cst_66 {dimension_numbers = #tpu.dot_dimension_numbers<[1], [0], [0], [1], [0, 0, 1, 1], [], []>} : vector<2x32xbf16>, vector<32x128xbf16>, vector<2x128xf32> -> vector<2x128xf32>
    %310 = arith.addf %307, %309 : vector<2x128xf32>
    %311 = arith.negf %310 : vector<2x128xf32>
    %312 = math.exp %311 : vector<2x128xf32>
    %cst_67 = arith.constant 1.000000e+00 : f32
    %313 = vector.broadcast %cst_67 : f32 to vector<2x128xf32>
    %314 = arith.addf %313, %312 : vector<2x128xf32>
    %315 = arith.divf %313, %314 : vector<2x128xf32>
    %316 = math.tanh %310 : vector<2x128xf32>
    %317 = vector.extract_strided_slice %315 {offsets = [0, 0], sizes = [2, 32], strides = [1, 1]} : vector<2x128xf32> to vector<2x32xf32>
    %318 = vector.extract_strided_slice %315 {offsets = [0, 32], sizes = [2, 32], strides = [1, 1]} : vector<2x128xf32> to vector<2x32xf32>
    %319 = vector.extract_strided_slice %316 {offsets = [0, 64], sizes = [2, 32], strides = [1, 1]} : vector<2x128xf32> to vector<2x32xf32>
    %320 = vector.extract_strided_slice %315 {offsets = [0, 96], sizes = [2, 32], strides = [1, 1]} : vector<2x128xf32> to vector<2x32xf32>
    %321 = arith.mulf %318, %304 : vector<2x32xf32>
    %322 = arith.mulf %317, %319 : vector<2x32xf32>
    %323 = arith.addf %321, %322 : vector<2x32xf32>
    %324 = math.tanh %323 : vector<2x32xf32>
    %325 = arith.mulf %320, %324 : vector<2x32xf32>
    %326 = vector.extract_strided_slice %188 {offsets = [14, 0], sizes = [2, 128], strides = [1, 1]} : vector<16x128xf32> to vector<2x128xf32>
    %327 = arith.truncf %325 : vector<2x32xf32> to vector<2x32xbf16>
    %cst_68 = arith.constant dense<0.000000e+00> : vector<2x128xf32>
    %328 = tpu.matmul %327, %183, %cst_68 {dimension_numbers = #tpu.dot_dimension_numbers<[1], [0], [0], [1], [0, 0, 1, 1], [], []>} : vector<2x32xbf16>, vector<32x128xbf16>, vector<2x128xf32> -> vector<2x128xf32>
    %329 = arith.addf %326, %328 : vector<2x128xf32>
    %330 = arith.negf %329 : vector<2x128xf32>
    %331 = math.exp %330 : vector<2x128xf32>
    %cst_69 = arith.constant 1.000000e+00 : f32
    %332 = vector.broadcast %cst_69 : f32 to vector<2x128xf32>
    %333 = arith.addf %332, %331 : vector<2x128xf32>
    %334 = arith.divf %332, %333 : vector<2x128xf32>
    %335 = math.tanh %329 : vector<2x128xf32>
    %336 = vector.extract_strided_slice %334 {offsets = [0, 0], sizes = [2, 32], strides = [1, 1]} : vector<2x128xf32> to vector<2x32xf32>
    %337 = vector.extract_strided_slice %334 {offsets = [0, 32], sizes = [2, 32], strides = [1, 1]} : vector<2x128xf32> to vector<2x32xf32>
    %338 = vector.extract_strided_slice %335 {offsets = [0, 64], sizes = [2, 32], strides = [1, 1]} : vector<2x128xf32> to vector<2x32xf32>
    %339 = vector.extract_strided_slice %334 {offsets = [0, 96], sizes = [2, 32], strides = [1, 1]} : vector<2x128xf32> to vector<2x32xf32>
    %340 = arith.mulf %337, %323 : vector<2x32xf32>
    %341 = arith.mulf %336, %338 : vector<2x32xf32>
    %342 = arith.addf %340, %341 : vector<2x32xf32>
    %343 = math.tanh %342 : vector<2x32xf32>
    %344 = arith.mulf %339, %343 : vector<2x32xf32>
    %c1_70 = arith.constant 1 : index
    %c0_71 = arith.constant 0 : index
    %c0_72 = arith.constant 0 : index
    %345 = vector.load %arg6[%c1_70, %c0_71, %c0_72] : memref<2x2x32xf32, #tpu.memory_space<vmem>>, vector<1x2x32xf32>
    %346 = vector.shape_cast %345 : vector<1x2x32xf32> to vector<2x32xf32>
    %347 = vector.shape_cast %344 : vector<2x32xf32> to vector<1x2x32xf32>
    tpu.vector_store %arg6[%c1_70, %c0_71, %c0_72], %347 {strides = array<i32>} : memref<2x2x32xf32, #tpu.memory_space<vmem>>, vector<1x2x32xf32>,
    %c1_73 = arith.constant 1 : index
    %c0_74 = arith.constant 0 : index
    %c0_75 = arith.constant 0 : index
    %348 = vector.load %arg7[%c1_73, %c0_74, %c0_75] : memref<2x2x32xf32, #tpu.memory_space<vmem>>, vector<1x2x32xf32>
    %349 = vector.shape_cast %348 : vector<1x2x32xf32> to vector<2x32xf32>
    %350 = vector.shape_cast %342 : vector<2x32xf32> to vector<1x2x32xf32>
    tpu.vector_store %arg7[%c1_73, %c0_74, %c0_75], %350 {strides = array<i32>} : memref<2x2x32xf32, #tpu.memory_space<vmem>>, vector<1x2x32xf32>,
    %c120 = arith.constant 120 : index
    %c0_76 = arith.constant 0 : index
    %351 = vector.load %arg4[%c120, %c0_76] : memref<248x128xf32, #tpu.memory_space<vmem>>, vector<32x128xf32>
    %352 = vector.extract_strided_slice %351 {offsets = [0, 0], sizes = [32, 32], strides = [1, 1]} : vector<32x128xf32> to vector<32x32xf32>
    %c152 = arith.constant 152 : index
    %c0_77 = arith.constant 0 : index
    %353 = vector.load %arg4[%c152, %c0_77] : memref<248x128xf32, #tpu.memory_space<vmem>>, vector<8x128xf32>
    %354 = vector.extract_strided_slice %353 {offsets = [0, 0], sizes = [4, 32], strides = [1, 1]} : vector<8x128xf32> to vector<4x32xf32>
    %c160 = arith.constant 160 : index
    %c0_78 = arith.constant 0 : index
    %355 = vector.load %arg4[%c160, %c0_78] : memref<248x128xf32, #tpu.memory_space<vmem>>, vector<8x128xf32>
    %356 = vector.extract_strided_slice %355 {offsets = [0, 0], sizes = [1, 32], strides = [1, 1]} : vector<8x128xf32> to vector<1x32xf32>
    %cst_79 = arith.constant dense<0.000000e+00> : vector<2x32xf32>
    %357 = tpu.matmul %344, %352, %cst_79 {dimension_numbers = #tpu.dot_dimension_numbers<[1], [0], [0], [1], [0, 0, 1, 1], [], []>} : vector<2x32xf32>, vector<32x32xf32>, vector<2x32xf32> -> vector<2x32xf32>
    %c0_80 = arith.constant 0 : index
    %c0_81 = arith.constant 0 : index
    %358 = vector.load %arg3[%c0_80, %c0_81] : memref<2x4xf32, #tpu.memory_space<vmem>>, vector<2x4xf32>
    %cst_82 = arith.constant dense<0.000000e+00> : vector<2x32xf32>
    %359 = tpu.matmul %358, %354, %cst_82 {dimension_numbers = #tpu.dot_dimension_numbers<[1], [0], [0], [1], [0, 0, 1, 1], [], []>} : vector<2x4xf32>, vector<4x32xf32>, vector<2x32xf32> -> vector<2x32xf32>
    %360 = arith.addf %357, %359 : vector<2x32xf32>
    %361 = vector.broadcast %356 : vector<1x32xf32> to vector<2x32xf32>
    %362 = arith.addf %360, %361 : vector<2x32xf32>
    %c168 = arith.constant 168 : index
    %c0_83 = arith.constant 0 : index
    %363 = vector.load %arg4[%c168, %c0_83] : memref<248x128xf32, #tpu.memory_space<vmem>>, vector<32x128xf32>
    %364 = vector.extract_strided_slice %363 {offsets = [0, 0], sizes = [32, 32], strides = [1, 1]} : vector<32x128xf32> to vector<32x32xf32>
    %c200 = arith.constant 200 : index
    %c0_84 = arith.constant 0 : index
    %365 = vector.load %arg4[%c200, %c0_84] : memref<248x128xf32, #tpu.memory_space<vmem>>, vector<8x128xf32>
    %366 = vector.extract_strided_slice %365 {offsets = [0, 0], sizes = [1, 32], strides = [1, 1]} : vector<8x128xf32> to vector<1x32xf32>
    %cst_85 = arith.constant dense<0.000000e+00> : vector<2x32xf32>
    %367 = tpu.matmul %362, %364, %cst_85 {dimension_numbers = #tpu.dot_dimension_numbers<[1], [0], [0], [1], [0, 0, 1, 1], [], []>} : vector<2x32xf32>, vector<32x32xf32>, vector<2x32xf32> -> vector<2x32xf32>
    %368 = vector.broadcast %366 : vector<1x32xf32> to vector<2x32xf32>
    %369 = arith.addf %367, %368 : vector<2x32xf32>
    %c208 = arith.constant 208 : index
    %c0_86 = arith.constant 0 : index
    %370 = vector.load %arg4[%c208, %c0_86] : memref<248x128xf32, #tpu.memory_space<vmem>>, vector<32x128xf32>
    %371 = vector.extract_strided_slice %370 {offsets = [0, 0], sizes = [32, 6], strides = [1, 1]} : vector<32x128xf32> to vector<32x6xf32>
    %c240 = arith.constant 240 : index
    %c0_87 = arith.constant 0 : index
    %372 = vector.load %arg4[%c240, %c0_87] : memref<248x128xf32, #tpu.memory_space<vmem>>, vector<8x128xf32>
    %373 = vector.extract_strided_slice %372 {offsets = [0, 0], sizes = [1, 6], strides = [1, 1]} : vector<8x128xf32> to vector<1x6xf32>
    %cst_88 = arith.constant dense<0.000000e+00> : vector<2x6xf32>
    %374 = tpu.matmul %369, %371, %cst_88 {dimension_numbers = #tpu.dot_dimension_numbers<[1], [0], [0], [1], [0, 0, 1, 1], [], []>} : vector<2x32xf32>, vector<32x6xf32>, vector<2x6xf32> -> vector<2x6xf32>
    %375 = vector.broadcast %373 : vector<1x6xf32> to vector<2x6xf32>
    %376 = arith.addf %374, %375 : vector<2x6xf32>
    %c0_89 = arith.constant 0 : index
    %c0_90 = arith.constant 0 : index
    %377 = vector.load %arg5[%c0_89, %c0_90] : memref<2x6xf32, #tpu.memory_space<vmem>>, vector<2x6xf32>
    tpu.vector_store %arg5[%c0_89, %c0_90], %376 {strides = array<i32>} : memref<2x6xf32, #tpu.memory_space<vmem>>, vector<2x6xf32>,
    return
  }
}

</mosaic_0001>

<llo_original>
// kernel: tpu_custom_call.1
$region0: #{tpu_custom_call.1}
  #allocation0 [shape = 'u32[]', space=smem, size = 0x4, offset = 0x4, fixed_abs, tag = 'smem constant byte address 0x4 - core index']
  #allocation1 [shape = 'u32[144,128]{1,0:T(1,128)}', space=vmem, size = 0x12000, scoped, tag = 'internal scratch']
  #allocation2 [shape = 'f32[16,32]{1,0:T(8,128)}', space=vmem, size = 0x2000, scoped, tag = 'scratch operand']
  %s0 = inlined_call_operand.vmem [shape: f32[16,6], index: 0, kind: input, shape index: {}]
  %s1 = inlined_call_operand.vmem [shape: f32[2,2,32], index: 1, kind: input, shape index: {}]
  %s2 = inlined_call_operand.vmem [shape: f32[2,2,32], index: 2, kind: input, shape index: {}]
  %s3 = inlined_call_operand.vmem [shape: f32[2,4], index: 3, kind: input, shape index: {}]
  %s4 = inlined_call_operand.hbm [shape: f32[248,128], index: 4, kind: input, shape index: {}]
  %s5 = inlined_call_operand.hbm [shape: f32[2,6], index: 5, kind: output, shape index: {0}]
  %s6 = inlined_call_operand.hbm [shape: f32[2,2,32], index: 6, kind: output, shape index: {1}]
  %s7 = inlined_call_operand.hbm [shape: f32[2,2,32], index: 7, kind: output, shape index: {2}]
  %8 = xla_tuple %s5, %s6, %s7
  %s9 = sld [smem:[#allocation0]]
  $region50: #{tpu_custom_call.1} parent=0
    _
  %s11 = ssub.s32 1, %s9
  %s12 = scalar_select 0, %s11, %s9
  $region1: #{tpu_custom_call.1} parent=0
    #allocation3 [shape = 'u8[126976]{0}', space=vmem, size = 0x1f000, scoped, tag = 'input window, operand 4, single buffered']
    #allocation4 [shape = 's32[1]{0}', space=sflag, size = 0x4, scoped, tag = 'scoped memory for tpu_custom_call.1']
    #allocation5 [shape = 's32[1]{0}', space=sflag, size = 0x4, scoped, tag = 'scoped memory for tpu_custom_call.1']
    #allocation6 [shape = 'u8[1024]{0}', space=vmem, size = 0x400, scoped, tag = 'output window, operand 0, single buffered']
    #allocation7 [shape = 'u8[2048]{0}', space=vmem, size = 0x800, scoped, tag = 'output window, operand 1, single buffered']
    #allocation8 [shape = 's32[1]{0}', space=sflag, size = 0x4, scoped, tag = 'scoped memory for tpu_custom_call.1']
    #allocation9 [shape = 'u8[2048]{0}', space=vmem, size = 0x800, scoped, tag = 'output window, operand 2, single buffered']
    %13 = vsyncpa [#allocation4], 0
    %14 = vsyncpa [#allocation5], 0
    %15 = vsyncpa [#allocation8], 0
    // Predicated region
    $region2: #{tpu_custom_call.1} parent=1 // pred_check
      _
    $region3: #{tpu_custom_call.1} parent=1 // pred_check_branch
      %17 = sbr.rel (0) target = $region5
    $region4: #{tpu_custom_call.1} parent=1 // pred_region
      _
    $region5: #{tpu_custom_call.1} parent=1 // pred_fallthru
      _
    // Predicated region
    $region6: #{tpu_custom_call.1} parent=1 // pred_check
      _
    $region7: #{tpu_custom_call.1} parent=1 // pred_check_branch
      %19 = sbr.rel (0) target = $region9
    $region8: #{tpu_custom_call.1} parent=1 // pred_region
      _
    $region9: #{tpu_custom_call.1} parent=1 // pred_fallthru
      _
    // Predicated region
    $region10: #{tpu_custom_call.1} parent=1 // pred_check
      _
    $region11: #{tpu_custom_call.1} parent=1 // pred_check_branch
      %21 = sbr.rel (0) target = $region13
    $region12: #{tpu_custom_call.1} parent=1 // pred_region
      _
    $region13: #{tpu_custom_call.1} parent=1 // pred_fallthru
      _
    // Predicated region
    $region14: #{tpu_custom_call.1} parent=1 // pred_check
      _
    $region15: #{tpu_custom_call.1} parent=1 // pred_check_branch
      %23 = sbr.rel (0) target = $region17
    $region16: #{tpu_custom_call.1} parent=1 // pred_region
      _
    $region17: #{tpu_custom_call.1} parent=1 // pred_fallthru
      _
    // Predicated region
    $region18: #{tpu_custom_call.1} parent=1 // pred_check
      _
    $region19: #{tpu_custom_call.1} parent=1 // pred_check_branch
      %25 = sbr.rel (0) target = $region21
    $region20: #{tpu_custom_call.1} parent=1 // pred_region
      %s27 = ssub.s32 3968, 3968
      %28 = vsyncadd [#allocation4], %s27
      %s29 = sshll.u32 [#allocation3], 4
      %s30 = int_to_ptr.vmem [resolvable:$true] %s29
      %35 = dma.hbm_to_vmem [thread:$0]  %s4, 3968, %s30, [#allocation4], 128, 128, 8
    $region21: #{tpu_custom_call.1} parent=1 // pred_fallthru
      _
    // Predicated region
    $region22: #{tpu_custom_call.1} parent=1 // pred_check
      _
    $region23: #{tpu_custom_call.1} parent=1 // pred_check_branch
      %37 = sbr.rel (0) target = $region25
    $region24: #{tpu_custom_call.1} parent=1 // pred_region
      %38 = dma.done [#allocation4], 3968
    $region25: #{tpu_custom_call.1} parent=1 // pred_fallthru
      _
    %v40 = vld [vmem:[%s0] sm:$0xff]
    %v41 = vld [vmem:[%s0 + $0x8] sm:$0xff]
    %v42 = vld [vmem:[#allocation3] sm:$0xff]
    %v43 = vld [vmem:[#allocation3 + $0x8] sm:$0xff]
    %v44 = vld [vmem:[#allocation3 + $0x10] sm:$0xff]
    %v45 = vld [vmem:[#allocation3 + $0x18] sm:$0xff]
    %v46 = vld [vmem:[#allocation3 + $0x20] sm:$0xff]
    %v47 = vpack.c.bf16 %v44, %v43
    %v48 = vpack.c.bf16 %v46, %v45
    %v49 = vld [vmem:[#allocation3 + $0x28] sm:$0xff]
    %v50 = vlaneseq
    %v51 = vshrl.u32 %v50, 7
    %v52 = vsub.s32 0, %v51
    %v53 = vrot.slane %v49, %v52
    %vm54 = vcmask 48128
    %v56 = vsel %vm54, %v40, 0
    %v59 = vsel %vm54, %v41, 0
    %vm61 = vcmask 1045504
    %v63 = vsel %vm61, %v42, 0
    %65 = vmatprep.subr.mxu0 0.0
    %66 = vmatpush1.msra.mxu0 %v63
    %67 = vmatprep.subr.mxu0 0.0
    %68 = vmatpush1.msra.mxu0 0.0
    %69 = vmatprep.subr.mxu0 0.0
    %70 = vmatpush1.msra.mxu0 0.0
    %71 = vmatprep.subr.mxu0 0.0
    %72 = vmatpush1.msra.mxu0 0.0
    %73 = vmatprep.subr.mxu0 0.0
    %74 = vmatpush1.msra.mxu0 0.0
    %75 = vmatprep.subr.mxu0 0.0
    %76 = vmatpush1.msra.mxu0 0.0
    %77 = vmatprep.subr.mxu0 0.0
    %78 = vmatpush1.msra.mxu0 0.0
    %79 = vmatprep.subr.mxu0 0.0
    %80 = vmatpush1.msra.mxu0 0.0
    %81 = vmatprep.subr.mxu0 0.0
    %82 = vmatpush1.msra.mxu0 0.0
    %83 = vmatprep.subr.mxu0 0.0
    %84 = vmatpush1.msra.mxu0 0.0
    %85 = vmatprep.subr.mxu0 0.0
    %86 = vmatpush1.msra.mxu0 0.0
    %87 = vmatprep.subr.mxu0 0.0
    %88 = vmatpush1.msra.mxu0 0.0
    %89 = vmatprep.subr.mxu0 0.0
    %90 = vmatpush1.msra.mxu0 0.0
    %91 = vmatprep.subr.mxu0 0.0
    %92 = vmatpush1.msra.mxu0 0.0
    %93 = vmatprep.subr.mxu0 0.0
    %94 = vmatpush1.msra.mxu0 0.0
    %95 = vmatprep.subr.mxu0 0.0
    %96 = vmatpush1.msra.mxu0 0.0
    %97 = vmatprep.subr.mxu0 0.0
    %98 = vmatpush1.msra.mxu0 0.0
    %99 = vmatprep.subr.mxu0 0.0
    %100 = vmatpush1.msra.mxu0 0.0
    %101 = vmatprep.subr.mxu0 0.0
    %102 = vmatpush1.msra.mxu0 0.0
    %103 = vmatprep.subr.mxu0 0.0
    %104 = vmatpush1.msra.mxu0 0.0
    %105 = vmatprep.subr.mxu0 0.0
    %106 = vmatpush1.msra.mxu0 0.0
    %107 = vmatprep.subr.mxu0 0.0
    %108 = vmatpush1.msra.mxu0 0.0
    %109 = vmatprep.subr.mxu0 0.0
    %110 = vmatpush1.msra.mxu0 0.0
    %111 = vmatprep.subr.mxu0 0.0
    %112 = vmatpush1.msra.mxu0 0.0
    %113 = vmatprep.subr.mxu0 0.0
    %114 = vmatpush1.msra.mxu0 0.0
    %115 = vmatprep.subr.mxu0 0.0
    %116 = vmatpush1.msra.mxu0 0.0
    %117 = vmatprep.subr.mxu0 0.0
    %118 = vmatpush1.msra.mxu0 0.0
    %119 = vmatprep.subr.mxu0 0.0
    %120 = vmatpush1.msra.mxu0 0.0
    %121 = vmatprep.subr.mxu0 0.0
    %122 = vmatpush1.msra.mxu0 0.0
    %123 = vmatprep.subr.mxu0 0.0
    %124 = vmatpush1.msra.mxu0 0.0
    %125 = vmatprep.subr.mxu0 0.0
    %126 = vmatpush1.msra.mxu0 0.0
    %127 = vmatprep.subr.mxu0 0.0
    %128 = vmatpush1.msra.mxu0 0.0
    %129 = vmatprep.mubr.f32.mxu0 0.0
    %130 = vmatmul.mubr.f32.gmra.mrb[0].mxu0 %v56
    %v131 = vpop.f32.mrb[0].mxu0
    %v132 = vadd.f32 %v53, %v131
    %v133 = vpop.f32.mrb[0].mxu0
    %134 = vmatprep.mubr.f32.mxu0 0.0
    %135 = vmatmul.mubr.f32.gmra.mrb[0].mxu0 %v59
    %v136 = vpop.f32.mrb[0].mxu0
    %v137 = vadd.f32 %v53, %v136
    %v138 = vpop.f32.mrb[0].mxu0
    %139 = vdwg.mxu0
    %v140 = vld [vmem:[%s1] sm:$0x3]
    %v141 = vld [vmem:[%s2] sm:$0x3]
    %v142 = vpack.c.bf16 %v140, %v140
    %vm143 = vcmask 261120
    %v145 = vsel %vm143, %v142, 0
    %147 = vmatprep.subr.bf16.mxu0 0
    %148 = vmatpush1.bf16.msra.mxu0 %v47
    %149 = vmatprep.subr.bf16.mxu0 0
    %150 = vmatpush1.bf16.msra.mxu0 %v48
    %151 = vmatprep.subr.bf16.mxu0 0
    %152 = vmatpush1.bf16.msra.mxu0 0
    %153 = vmatprep.subr.bf16.mxu0 0
    %154 = vmatpush1.bf16.msra.mxu0 0
    %155 = vmatprep.subr.bf16.mxu0 0
    %156 = vmatpush1.bf16.msra.mxu0 0
    %157 = vmatprep.subr.bf16.mxu0 0
    %158 = vmatpush1.bf16.msra.mxu0 0
    %159 = vmatprep.subr.bf16.mxu0 0
    %160 = vmatpush1.bf16.msra.mxu0 0
    %161 = vmatprep.subr.bf16.mxu0 0
    %162 = vmatpush1.bf16.msra.mxu0 0
    %163 = vmatprep.subr.bf16.mxu0 0
    %164 = vmatpush1.bf16.msra.mxu0 0
    %165 = vmatprep.subr.bf16.mxu0 0
    %166 = vmatpush1.bf16.msra.mxu0 0
    %167 = vmatprep.subr.bf16.mxu0 0
    %168 = vmatpush1.bf16.msra.mxu0 0
    %169 = vmatprep.subr.bf16.mxu0 0
    %170 = vmatpush1.bf16.msra.mxu0 0
    %171 = vmatprep.subr.bf16.mxu0 0
    %172 = vmatpush1.bf16.msra.mxu0 0
    %173 = vmatprep.subr.bf16.mxu0 0
    %174 = vmatpush1.bf16.msra.mxu0 0
    %175 = vmatprep.subr.bf16.mxu0 0
    %176 = vmatpush1.bf16.msra.mxu0 0
    %177 = vmatprep.subr.bf16.mxu0 0
    %178 = vmatpush1.bf16.msra.mxu0 0
    %179 = vmatprep.mubr.bf16.mxu0 0
    %180 = vmatmul.mubr.bf16.gmra.mrb[0].mxu0 %v145
    %v181 = vpop.f32.mrb[0].mxu0
    %v182 = vadd.f32 0.0, %v181
    %v183 = vpop.f32.mrb[0].mxu0
    %v184 = vpop.f32.mrb[0].mxu0
    %v185 = vpop.f32.mrb[0].mxu0
    %186 = vdwg.mxu0
    %v187 = vadd.f32 %v132, %v182
    %v188 = vxor.u32 %v187, 2147483648
    %v189 = vmul.f32 %v188, 1.442695
    %v190 = vpow.pop %v189
    %v191 = vadd.f32 %v190, 1.0
    %v192 = vrcp.pop %v191
    %v193 = vmul.f32 1.0, %v192
    %v194 = vtanh.pop %v187
    %196 = vrot.lane.b32.xlu0 %v141, 32
    %v197 = vpop.permute.xlu0 %196
    %v199 = vmul.f32 %v193, %v197
    %201 = vrot.lane.b32.xlu0 %v194, 64
    %v202 = vpop.permute.xlu0 %201
    %v204 = vmul.f32 %v193, %v202
    %206 = vrot.lane.b32.xlu0 %v204, 32
    %v207 = vpop.permute.xlu0 %206
    %v209 = vadd.f32 %v199, %v207
    %v210 = vtanh.pop %v209
    %212 = vrot.lane.b32.xlu0 %v210, 64
    %v213 = vpop.permute.xlu0 %212
    %v215 = vmul.f32 %v193, %v213
    %217 = vrot.lane.b32.xlu0 %v215, 32
    %v218 = vpop.permute.xlu0 %217
    %vm220 = vcmask 254976
    %221 = vst.msk [vmem:[#allocation2] sm:$0x3] %vm220, %v218
    %v222 = vpack.c.bf16 %v215, %v215
    %224 = vrot.lane.b32.xlu0 %v222, 32
    %v225 = vpop.permute.xlu0 %224
    %v227 = vsel %vm143, %v225, 0
    %229 = vmatprep.subr.bf16.mxu0 0
    %230 = vmatpush1.bf16.msra.mxu0 %v47
    %231 = vmatprep.subr.bf16.mxu0 0
    %232 = vmatpush1.bf16.msra.mxu0 %v48
    %233 = vmatprep.subr.bf16.mxu0 0
    %234 = vmatpush1.bf16.msra.mxu0 0
    %235 = vmatprep.subr.bf16.mxu0 0
    %236 = vmatpush1.bf16.msra.mxu0 0
    %237 = vmatprep.subr.bf16.mxu0 0
    %238 = vmatpush1.bf16.msra.mxu0 0
    %239 = vmatprep.subr.bf16.mxu0 0
    %240 = vmatpush1.bf16.msra.mxu0 0
    %241 = vmatprep.subr.bf16.mxu0 0
    %242 = vmatpush1.bf16.msra.mxu0 0
    %243 = vmatprep.subr.bf16.mxu0 0
    %244 = vmatpush1.bf16.msra.mxu0 0
    %245 = vmatprep.subr.bf16.mxu0 0
    %246 = vmatpush1.bf16.msra.mxu0 0
    %247 = vmatprep.subr.bf16.mxu0 0
    %248 = vmatpush1.bf16.msra.mxu0 0
    %249 = vmatprep.subr.bf16.mxu0 0
    %250 = vmatpush1.bf16.msra.mxu0 0
    %251 = vmatprep.subr.bf16.mxu0 0
    %252 = vmatpush1.bf16.msra.mxu0 0
    %253 = vmatprep.subr.bf16.mxu0 0
    %254 = vmatpush1.bf16.msra.mxu0 0
    %255 = vmatprep.subr.bf16.mxu0 0
    %256 = vmatpush1.bf16.msra.mxu0 0
    %257 = vmatprep.subr.bf16.mxu0 0
    %258 = vmatpush1.bf16.msra.mxu0 0
    %259 = vmatprep.subr.bf16.mxu0 0
    %260 = vmatpush1.bf16.msra.mxu0 0
    %261 = vmatprep.mubr.bf16.mxu0 0
    %262 = vmatmul.mubr.bf16.gmra.mrb[0].mxu0 %v227
    %v263 = vpop.f32.mrb[0].mxu0
    %v264 = vadd.f32 0.0, %v263
    %v265 = vpop.f32.mrb[0].mxu0
    %v266 = vpop.f32.mrb[0].mxu0
    %v267 = vpop.f32.mrb[0].mxu0
    %268 = vdwg.mxu0
    %v270 = vrot.slane %v264, 6
    %v272 = vadd.f32 %v132, %v270
    %v273 = vxor.u32 %v272, 2147483648
    %v274 = vmul.f32 %v273, 1.442695
    %v275 = vpow.pop %v274
    %v276 = vadd.f32 %v275, 1.0
    %v277 = vrcp.pop %v276
    %v278 = vmul.f32 1.0, %v277
    %v279 = vtanh.pop %v272
    %v281 = vrot.slane %v209, 6
    %v283 = vmul.f32 %v278, %v281
    %285 = vrot.lane.b32.xlu0 %v279, 64
    %v286 = vpop.permute.xlu0 %285
    %v288 = vmul.f32 %v278, %v286
    %290 = vrot.lane.b32.xlu0 %v288, 32
    %v291 = vpop.permute.xlu0 %290
    %v293 = vadd.f32 %v283, %v291
    %v294 = vtanh.pop %v293
    %296 = vrot.lane.b32.xlu0 %v294, 64
    %v297 = vpop.permute.xlu0 %296
    %v299 = vmul.f32 %v278, %v297
    %301 = vrot.lane.b32.xlu0 %v299, 32
    %v302 = vpop.permute.xlu0 %301
    %vm304 = vcmask 257026
    %305 = vst.msk [vmem:[#allocation2] sm:$0xc] %vm304, %v302
    %v306 = vpack.c.bf16 %v299, %v299
    %v308 = vrot.slane %v306, 1
    %309 = vrot.lane.b32.xlu0 %v308, 32
    %v310 = vpop.permute.xlu0 %309
    %v312 = vsel %vm143, %v310, 0
    %314 = vmatprep.subr.bf16.mxu0 0
    %315 = vmatpush1.bf16.msra.mxu0 %v47
    %316 = vmatprep.subr.bf16.mxu0 0
    %317 = vmatpush1.bf16.msra.mxu0 %v48
    %318 = vmatprep.subr.bf16.mxu0 0
    %319 = vmatpush1.bf16.msra.mxu0 0
    %320 = vmatprep.subr.bf16.mxu0 0
    %321 = vmatpush1.bf16.msra.mxu0 0
    %322 = vmatprep.subr.bf16.mxu0 0
    %323 = vmatpush1.bf16.msra.mxu0 0
    %324 = vmatprep.subr.bf16.mxu0 0
    %325 = vmatpush1.bf16.msra.mxu0 0
    %326 = vmatprep.subr.bf16.mxu0 0
    %327 = vmatpush1.bf16.msra.mxu0 0
    %328 = vmatprep.subr.bf16.mxu0 0
    %329 = vmatpush1.bf16.msra.mxu0 0
    %330 = vmatprep.subr.bf16.mxu0 0
    %331 = vmatpush1.bf16.msra.mxu0 0
    %332 = vmatprep.subr.bf16.mxu0 0
    %333 = vmatpush1.bf16.msra.mxu0 0
    %334 = vmatprep.subr.bf16.mxu0 0
    %335 = vmatpush1.bf16.msra.mxu0 0
    %336 = vmatprep.subr.bf16.mxu0 0
    %337 = vmatpush1.bf16.msra.mxu0 0
    %338 = vmatprep.subr.bf16.mxu0 0
    %339 = vmatpush1.bf16.msra.mxu0 0
    %340 = vmatprep.subr.bf16.mxu0 0
    %341 = vmatpush1.bf16.msra.mxu0 0
    %342 = vmatprep.subr.bf16.mxu0 0
    %343 = vmatpush1.bf16.msra.mxu0 0
    %344 = vmatprep.subr.bf16.mxu0 0
    %345 = vmatpush1.bf16.msra.mxu0 0
    %346 = vmatprep.mubr.bf16.mxu0 0
    %347 = vmatmul.mubr.bf16.gmra.mrb[0].mxu0 %v312
    %v348 = vpop.f32.mrb[0].mxu0
    %v349 = vadd.f32 0.0, %v348
    %v350 = vpop.f32.mrb[0].mxu0
    %v351 = vpop.f32.mrb[0].mxu0
    %v352 = vpop.f32.mrb[0].mxu0
    %353 = vdwg.mxu0
    %v355 = vrot.slane %v349, 4
    %v357 = vadd.f32 %v132, %v355
    %v358 = vxor.u32 %v357, 2147483648
    %v359 = vmul.f32 %v358, 1.442695
    %v360 = vpow.pop %v359
    %v361 = vadd.f32 %v360, 1.0
    %v362 = vrcp.pop %v361
    %v363 = vmul.f32 1.0, %v362
    %v364 = vtanh.pop %v357
    %v366 = vrot.slane %v293, 6
    %v368 = vmul.f32 %v363, %v366
    %370 = vrot.lane.b32.xlu0 %v364, 64
    %v371 = vpop.permute.xlu0 %370
    %v373 = vmul.f32 %v363, %v371
    %375 = vrot.lane.b32.xlu0 %v373, 32
    %v376 = vpop.permute.xlu0 %375
    %v378 = vadd.f32 %v368, %v376
    %v379 = vtanh.pop %v378
    %381 = vrot.lane.b32.xlu0 %v379, 64
    %v382 = vpop.permute.xlu0 %381
    %v384 = vmul.f32 %v363, %v382
    %386 = vrot.lane.b32.xlu0 %v384, 32
    %v387 = vpop.permute.xlu0 %386
    %vm389 = vcmask 259076
    %390 = vst.msk [vmem:[#allocation2] sm:$0x30] %vm389, %v387
    %v391 = vpack.c.bf16 %v384, %v384
    %v393 = vrot.slane %v391, 2
    %394 = vrot.lane.b32.xlu0 %v393, 32
    %v395 = vpop.permute.xlu0 %394
    %v397 = vsel %vm143, %v395, 0
    %399 = vmatprep.subr.bf16.mxu0 0
    %400 = vmatpush1.bf16.msra.mxu0 %v47
    %401 = vmatprep.subr.bf16.mxu0 0
    %402 = vmatpush1.bf16.msra.mxu0 %v48
    %403 = vmatprep.subr.bf16.mxu0 0
    %404 = vmatpush1.bf16.msra.mxu0 0
    %405 = vmatprep.subr.bf16.mxu0 0
    %406 = vmatpush1.bf16.msra.mxu0 0
    %407 = vmatprep.subr.bf16.mxu0 0
    %408 = vmatpush1.bf16.msra.mxu0 0
    %409 = vmatprep.subr.bf16.mxu0 0
    %410 = vmatpush1.bf16.msra.mxu0 0
    %411 = vmatprep.subr.bf16.mxu0 0
    %412 = vmatpush1.bf16.msra.mxu0 0
    %413 = vmatprep.subr.bf16.mxu0 0
    %414 = vmatpush1.bf16.msra.mxu0 0
    %415 = vmatprep.subr.bf16.mxu0 0
    %416 = vmatpush1.bf16.msra.mxu0 0
    %417 = vmatprep.subr.bf16.mxu0 0
    %418 = vmatpush1.bf16.msra.mxu0 0
    %419 = vmatprep.subr.bf16.mxu0 0
    %420 = vmatpush1.bf16.msra.mxu0 0
    %421 = vmatprep.subr.bf16.mxu0 0
    %422 = vmatpush1.bf16.msra.mxu0 0
    %423 = vmatprep.subr.bf16.mxu0 0
    %424 = vmatpush1.bf16.msra.mxu0 0
    %425 = vmatprep.subr.bf16.mxu0 0
    %426 = vmatpush1.bf16.msra.mxu0 0
    %427 = vmatprep.subr.bf16.mxu0 0
    %428 = vmatpush1.bf16.msra.mxu0 0
    %429 = vmatprep.subr.bf16.mxu0 0
    %430 = vmatpush1.bf16.msra.mxu0 0
    %431 = vmatprep.mubr.bf16.mxu0 0
    %432 = vmatmul.mubr.bf16.gmra.mrb[0].mxu0 %v397
    %v433 = vpop.f32.mrb[0].mxu0
    %v434 = vadd.f32 0.0, %v433
    %v435 = vpop.f32.mrb[0].mxu0
    %v436 = vpop.f32.mrb[0].mxu0
    %v437 = vpop.f32.mrb[0].mxu0
    %438 = vdwg.mxu0
    %v440 = vrot.slane %v434, 2
    %v442 = vadd.f32 %v132, %v440
    %v443 = vxor.u32 %v442, 2147483648
    %v444 = vmul.f32 %v443, 1.442695
    %v445 = vpow.pop %v444
    %v446 = vadd.f32 %v445, 1.0
    %v447 = vrcp.pop %v446
    %v448 = vmul.f32 1.0, %v447
    %v449 = vtanh.pop %v442
    %v451 = vrot.slane %v378, 6
    %v453 = vmul.f32 %v448, %v451
    %455 = vrot.lane.b32.xlu0 %v449, 64
    %v456 = vpop.permute.xlu0 %455
    %v458 = vmul.f32 %v448, %v456
    %460 = vrot.lane.b32.xlu0 %v458, 32
    %v461 = vpop.permute.xlu0 %460
    %v463 = vadd.f32 %v453, %v461
    %v464 = vtanh.pop %v463
    %466 = vrot.lane.b32.xlu0 %v464, 64
    %v467 = vpop.permute.xlu0 %466
    %v469 = vmul.f32 %v448, %v467
    %471 = vrot.lane.b32.xlu0 %v469, 32
    %v472 = vpop.permute.xlu0 %471
    %vm474 = vcmask 261126
    %475 = vst.msk [vmem:[#allocation2] sm:$0xc0] %vm474, %v472
    %v476 = vpack.c.bf16 %v469, %v469
    %v478 = vrot.slane %v476, 3
    %479 = vrot.lane.b32.xlu0 %v478, 32
    %v480 = vpop.permute.xlu0 %479
    %v482 = vsel %vm143, %v480, 0
    %484 = vmatprep.subr.bf16.mxu0 0
    %485 = vmatpush1.bf16.msra.mxu0 %v47
    %486 = vmatprep.subr.bf16.mxu0 0
    %487 = vmatpush1.bf16.msra.mxu0 %v48
    %488 = vmatprep.subr.bf16.mxu0 0
    %489 = vmatpush1.bf16.msra.mxu0 0
    %490 = vmatprep.subr.bf16.mxu0 0
    %491 = vmatpush1.bf16.msra.mxu0 0
    %492 = vmatprep.subr.bf16.mxu0 0
    %493 = vmatpush1.bf16.msra.mxu0 0
    %494 = vmatprep.subr.bf16.mxu0 0
    %495 = vmatpush1.bf16.msra.mxu0 0
    %496 = vmatprep.subr.bf16.mxu0 0
    %497 = vmatpush1.bf16.msra.mxu0 0
    %498 = vmatprep.subr.bf16.mxu0 0
    %499 = vmatpush1.bf16.msra.mxu0 0
    %500 = vmatprep.subr.bf16.mxu0 0
    %501 = vmatpush1.bf16.msra.mxu0 0
    %502 = vmatprep.subr.bf16.mxu0 0
    %503 = vmatpush1.bf16.msra.mxu0 0
    %504 = vmatprep.subr.bf16.mxu0 0
    %505 = vmatpush1.bf16.msra.mxu0 0
    %506 = vmatprep.subr.bf16.mxu0 0
    %507 = vmatpush1.bf16.msra.mxu0 0
    %508 = vmatprep.subr.bf16.mxu0 0
    %509 = vmatpush1.bf16.msra.mxu0 0
    %510 = vmatprep.subr.bf16.mxu0 0
    %511 = vmatpush1.bf16.msra.mxu0 0
    %512 = vmatprep.subr.bf16.mxu0 0
    %513 = vmatpush1.bf16.msra.mxu0 0
    %514 = vmatprep.subr.bf16.mxu0 0
    %515 = vmatpush1.bf16.msra.mxu0 0
    %516 = vmatprep.mubr.bf16.mxu0 0
    %517 = vmatmul.mubr.bf16.gmra.mrb[0].mxu0 %v482
    %v518 = vpop.f32.mrb[0].mxu0
    %v519 = vadd.f32 0.0, %v518
    %v520 = vpop.f32.mrb[0].mxu0
    %v521 = vpop.f32.mrb[0].mxu0
    %v522 = vpop.f32.mrb[0].mxu0
    %523 = vdwg.mxu0
    %v524 = vadd.f32 %v137, %v519
    %v525 = vxor.u32 %v524, 2147483648
    %v526 = vmul.f32 %v525, 1.442695
    %v527 = vpow.pop %v526
    %v528 = vadd.f32 %v527, 1.0
    %v529 = vrcp.pop %v528
    %v530 = vmul.f32 1.0, %v529
    %v531 = vtanh.pop %v524
    %v533 = vrot.slane %v463, 6
    %v535 = vmul.f32 %v530, %v533
    %537 = vrot.lane.b32.xlu0 %v531, 64
    %v538 = vpop.permute.xlu0 %537
    %v540 = vmul.f32 %v530, %v538
    %542 = vrot.lane.b32.xlu0 %v540, 32
    %v543 = vpop.permute.xlu0 %542
    %v545 = vadd.f32 %v535, %v543
    %v546 = vtanh.pop %v545
    %548 = vrot.lane.b32.xlu0 %v546, 64
    %v549 = vpop.permute.xlu0 %548
    %v551 = vmul.f32 %v530, %v549
    %553 = vrot.lane.b32.xlu0 %v551, 32
    %v554 = vpop.permute.xlu0 %553
    %556 = vst.msk [vmem:[#allocation2 + $0x8] sm:$0x3] %vm220, %v554
    %v557 = vpack.c.bf16 %v551, %v551
    %559 = vrot.lane.b32.xlu0 %v557, 32
    %v560 = vpop.permute.xlu0 %559
    %v562 = vsel %vm143, %v560, 0
    %564 = vmatprep.subr.bf16.mxu0 0
    %565 = vmatpush1.bf16.msra.mxu0 %v47
    %566 = vmatprep.subr.bf16.mxu0 0
    %567 = vmatpush1.bf16.msra.mxu0 %v48
    %568 = vmatprep.subr.bf16.mxu0 0
    %569 = vmatpush1.bf16.msra.mxu0 0
    %570 = vmatprep.subr.bf16.mxu0 0
    %571 = vmatpush1.bf16.msra.mxu0 0
    %572 = vmatprep.subr.bf16.mxu0 0
    %573 = vmatpush1.bf16.msra.mxu0 0
    %574 = vmatprep.subr.bf16.mxu0 0
    %575 = vmatpush1.bf16.msra.mxu0 0
    %576 = vmatprep.subr.bf16.mxu0 0
    %577 = vmatpush1.bf16.msra.mxu0 0
    %578 = vmatprep.subr.bf16.mxu0 0
    %579 = vmatpush1.bf16.msra.mxu0 0
    %580 = vmatprep.subr.bf16.mxu0 0
    %581 = vmatpush1.bf16.msra.mxu0 0
    %582 = vmatprep.subr.bf16.mxu0 0
    %583 = vmatpush1.bf16.msra.mxu0 0
    %584 = vmatprep.subr.bf16.mxu0 0
    %585 = vmatpush1.bf16.msra.mxu0 0
    %586 = vmatprep.subr.bf16.mxu0 0
    %587 = vmatpush1.bf16.msra.mxu0 0
    %588 = vmatprep.subr.bf16.mxu0 0
    %589 = vmatpush1.bf16.msra.mxu0 0
    %590 = vmatprep.subr.bf16.mxu0 0
    %591 = vmatpush1.bf16.msra.mxu0 0
    %592 = vmatprep.subr.bf16.mxu0 0
    %593 = vmatpush1.bf16.msra.mxu0 0
    %594 = vmatprep.subr.bf16.mxu0 0
    %595 = vmatpush1.bf16.msra.mxu0 0
    %596 = vmatprep.mubr.bf16.mxu0 0
    %597 = vmatmul.mubr.bf16.gmra.mrb[0].mxu0 %v562
    %v598 = vpop.f32.mrb[0].mxu0
    %v599 = vadd.f32 0.0, %v598
    %v600 = vpop.f32.mrb[0].mxu0
    %v601 = vpop.f32.mrb[0].mxu0
    %v602 = vpop.f32.mrb[0].mxu0
    %603 = vdwg.mxu0
    %v605 = vrot.slane %v599, 6
    %v607 = vadd.f32 %v137, %v605
    %v608 = vxor.u32 %v607, 2147483648
    %v609 = vmul.f32 %v608, 1.442695
    %v610 = vpow.pop %v609
    %v611 = vadd.f32 %v610, 1.0
    %v612 = vrcp.pop %v611
    %v613 = vmul.f32 1.0, %v612
    %v614 = vtanh.pop %v607
    %v616 = vrot.slane %v545, 6
    %v618 = vmul.f32 %v613, %v616
    %620 = vrot.lane.b32.xlu0 %v614, 64
    %v621 = vpop.permute.xlu0 %620
    %v623 = vmul.f32 %v613, %v621
    %625 = vrot.lane.b32.xlu0 %v623, 32
    %v626 = vpop.permute.xlu0 %625
    %v628 = vadd.f32 %v618, %v626
    %v629 = vtanh.pop %v628
    %631 = vrot.lane.b32.xlu0 %v629, 64
    %v632 = vpop.permute.xlu0 %631
    %v634 = vmul.f32 %v613, %v632
    %636 = vrot.lane.b32.xlu0 %v634, 32
    %v637 = vpop.permute.xlu0 %636
    %639 = vst.msk [vmem:[#allocation2 + $0x8] sm:$0xc] %vm304, %v637
    %v640 = vpack.c.bf16 %v634, %v634
    %v642 = vrot.slane %v640, 1
    %643 = vrot.lane.b32.xlu0 %v642, 32
    %v644 = vpop.permute.xlu0 %643
    %v646 = vsel %vm143, %v644, 0
    %648 = vmatprep.subr.bf16.mxu0 0
    %649 = vmatpush1.bf16.msra.mxu0 %v47
    %650 = vmatprep.subr.bf16.mxu0 0
    %651 = vmatpush1.bf16.msra.mxu0 %v48
    %652 = vmatprep.subr.bf16.mxu0 0
    %653 = vmatpush1.bf16.msra.mxu0 0
    %654 = vmatprep.subr.bf16.mxu0 0
    %655 = vmatpush1.bf16.msra.mxu0 0
    %656 = vmatprep.subr.bf16.mxu0 0
    %657 = vmatpush1.bf16.msra.mxu0 0
    %658 = vmatprep.subr.bf16.mxu0 0
    %659 = vmatpush1.bf16.msra.mxu0 0
    %660 = vmatprep.subr.bf16.mxu0 0
    %661 = vmatpush1.bf16.msra.mxu0 0
    %662 = vmatprep.subr.bf16.mxu0 0
    %663 = vmatpush1.bf16.msra.mxu0 0
    %664 = vmatprep.subr.bf16.mxu0 0
    %665 = vmatpush1.bf16.msra.mxu0 0
    %666 = vmatprep.subr.bf16.mxu0 0
    %667 = vmatpush1.bf16.msra.mxu0 0
    %668 = vmatprep.subr.bf16.mxu0 0
    %669 = vmatpush1.bf16.msra.mxu0 0
    %670 = vmatprep.subr.bf16.mxu0 0
    %671 = vmatpush1.bf16.msra.mxu0 0
    %672 = vmatprep.subr.bf16.mxu0 0
    %673 = vmatpush1.bf16.msra.mxu0 0
    %674 = vmatprep.subr.bf16.mxu0 0
    %675 = vmatpush1.bf16.msra.mxu0 0
    %676 = vmatprep.subr.bf16.mxu0 0
    %677 = vmatpush1.bf16.msra.mxu0 0
    %678 = vmatprep.subr.bf16.mxu0 0
    %679 = vmatpush1.bf16.msra.mxu0 0
    %680 = vmatprep.mubr.bf16.mxu0 0
    %681 = vmatmul.mubr.bf16.gmra.mrb[0].mxu0 %v646
    %v682 = vpop.f32.mrb[0].mxu0
    %v683 = vadd.f32 0.0, %v682
    %v684 = vpop.f32.mrb[0].mxu0
    %v685 = vpop.f32.mrb[0].mxu0
    %v686 = vpop.f32.mrb[0].mxu0
    %687 = vdwg.mxu0
    %v689 = vrot.slane %v683, 4
    %v691 = vadd.f32 %v137, %v689
    %v692 = vxor.u32 %v691, 2147483648
    %v693 = vmul.f32 %v692, 1.442695
    %v694 = vpow.pop %v693
    %v695 = vadd.f32 %v694, 1.0
    %v696 = vrcp.pop %v695
    %v697 = vmul.f32 1.0, %v696
    %v698 = vtanh.pop %v691
    %v700 = vrot.slane %v628, 6
    %v702 = vmul.f32 %v697, %v700
    %704 = vrot.lane.b32.xlu0 %v698, 64
    %v705 = vpop.permute.xlu0 %704
    %v707 = vmul.f32 %v697, %v705
    %709 = vrot.lane.b32.xlu0 %v707, 32
    %v710 = vpop.permute.xlu0 %709
    %v712 = vadd.f32 %v702, %v710
    %v713 = vtanh.pop %v712
    %715 = vrot.lane.b32.xlu0 %v713, 64
    %v716 = vpop.permute.xlu0 %715
    %v718 = vmul.f32 %v697, %v716
    %720 = vrot.lane.b32.xlu0 %v718, 32
    %v721 = vpop.permute.xlu0 %720
    %723 = vst.msk [vmem:[#allocation2 + $0x8] sm:$0x30] %vm389, %v721
    %v724 = vpack.c.bf16 %v718, %v718
    %v726 = vrot.slane %v724, 2
    %727 = vrot.lane.b32.xlu0 %v726, 32
    %v728 = vpop.permute.xlu0 %727
    %v730 = vsel %vm143, %v728, 0
    %732 = vmatprep.subr.bf16.mxu0 0
    %733 = vmatpush1.bf16.msra.mxu0 %v47
    %734 = vmatprep.subr.bf16.mxu0 0
    %735 = vmatpush1.bf16.msra.mxu0 %v48
    %736 = vmatprep.subr.bf16.mxu0 0
    %737 = vmatpush1.bf16.msra.mxu0 0
    %738 = vmatprep.subr.bf16.mxu0 0
    %739 = vmatpush1.bf16.msra.mxu0 0
    %740 = vmatprep.subr.bf16.mxu0 0
    %741 = vmatpush1.bf16.msra.mxu0 0
    %742 = vmatprep.subr.bf16.mxu0 0
    %743 = vmatpush1.bf16.msra.mxu0 0
    %744 = vmatprep.subr.bf16.mxu0 0
    %745 = vmatpush1.bf16.msra.mxu0 0
    %746 = vmatprep.subr.bf16.mxu0 0
    %747 = vmatpush1.bf16.msra.mxu0 0
    %748 = vmatprep.subr.bf16.mxu0 0
    %749 = vmatpush1.bf16.msra.mxu0 0
    %750 = vmatprep.subr.bf16.mxu0 0
    %751 = vmatpush1.bf16.msra.mxu0 0
    %752 = vmatprep.subr.bf16.mxu0 0
    %753 = vmatpush1.bf16.msra.mxu0 0
    %754 = vmatprep.subr.bf16.mxu0 0
    %755 = vmatpush1.bf16.msra.mxu0 0
    %756 = vmatprep.subr.bf16.mxu0 0
    %757 = vmatpush1.bf16.msra.mxu0 0
    %758 = vmatprep.subr.bf16.mxu0 0
    %759 = vmatpush1.bf16.msra.mxu0 0
    %760 = vmatprep.subr.bf16.mxu0 0
    %761 = vmatpush1.bf16.msra.mxu0 0
    %762 = vmatprep.subr.bf16.mxu0 0
    %763 = vmatpush1.bf16.msra.mxu0 0
    %764 = vmatprep.mubr.bf16.mxu0 0
    %765 = vmatmul.mubr.bf16.gmra.mrb[0].mxu0 %v730
    %v766 = vpop.f32.mrb[0].mxu0
    %v767 = vadd.f32 0.0, %v766
    %v768 = vpop.f32.mrb[0].mxu0
    %v769 = vpop.f32.mrb[0].mxu0
    %v770 = vpop.f32.mrb[0].mxu0
    %771 = vdwg.mxu0
    %v773 = vrot.slane %v767, 2
    %v775 = vadd.f32 %v137, %v773
    %v776 = vxor.u32 %v775, 2147483648
    %v777 = vmul.f32 %v776, 1.442695
    %v778 = vpow.pop %v777
    %v779 = vadd.f32 %v778, 1.0
    %v780 = vrcp.pop %v779
    %v781 = vmul.f32 1.0, %v780
    %v782 = vtanh.pop %v775
    %v784 = vrot.slane %v712, 6
    %v786 = vmul.f32 %v781, %v784
    %788 = vrot.lane.b32.xlu0 %v782, 64
    %v789 = vpop.permute.xlu0 %788
    %v791 = vmul.f32 %v781, %v789
    %793 = vrot.lane.b32.xlu0 %v791, 32
    %v794 = vpop.permute.xlu0 %793
    %v796 = vadd.f32 %v786, %v794
    %v797 = vtanh.pop %v796
    %799 = vrot.lane.b32.xlu0 %v797, 64
    %v800 = vpop.permute.xlu0 %799
    %v802 = vmul.f32 %v781, %v800
    %804 = vrot.lane.b32.xlu0 %v802, 32
    %v805 = vpop.permute.xlu0 %804
    %807 = vst.msk [vmem:[#allocation2 + $0x8] sm:$0xc0] %vm474, %v805
    %808 = vst.msk [vmem:[#allocation7 - $0x6] sm:$0xc0] %vm474, %v805
    %810 = vrot.lane.b32.xlu0 %v796, 96
    %v811 = vpop.permute.xlu0 %810
    %813 = vst.msk [vmem:[#allocation9 - $0x6] sm:$0xc0] %vm474, %v811
    %v814 = vld [vmem:[#allocation2] sm:$0xff]
    %v815 = vld [vmem:[#allocation2 + $0x8] sm:$0xff]
    %v816 = vld [vmem:[#allocation3 + $0x30] sm:$0xff]
    %v817 = vld [vmem:[#allocation3 + $0x38] sm:$0xff]
    %v818 = vld [vmem:[#allocation3 + $0x40] sm:$0xff]
    %v819 = vld [vmem:[#allocation3 + $0x48] sm:$0xff]
    %v820 = vld [vmem:[#allocation3 + $0x50] sm:$0xff]
    %v821 = vld [vmem:[#allocation3 + $0x58] sm:$0xff]
    %v822 = vld [vmem:[#allocation3 + $0x60] sm:$0xff]
    %v823 = vld [vmem:[#allocation3 + $0x68] sm:$0xff]
    %v824 = vpack.c.bf16 %v821, %v820
    %v825 = vpack.c.bf16 %v823, %v822
    %v826 = vld [vmem:[#allocation3 + $0x70] sm:$0xff]
    %v827 = vlaneseq
    %v828 = vshrl.u32 %v827, 7
    %v829 = vsub.s32 0, %v828
    %v830 = vrot.slane %v826, %v829
    %v832 = vsel %vm143, %v814, 0
    %v835 = vsel %vm143, %v815, 0
    %837 = vmatprep.subr.mxu0 0.0
    %838 = vmatpush1.msra.mxu0 %v816
    %839 = vmatprep.subr.mxu0 0.0
    %840 = vmatpush1.msra.mxu0 %v817
    %841 = vmatprep.subr.mxu0 0.0
    %842 = vmatpush1.msra.mxu0 %v818
    %843 = vmatprep.subr.mxu0 0.0
    %844 = vmatpush1.msra.mxu0 %v819
    %845 = vmatprep.subr.mxu0 0.0
    %846 = vmatpush1.msra.mxu0 0.0
    %847 = vmatprep.subr.mxu0 0.0
    %848 = vmatpush1.msra.mxu0 0.0
    %849 = vmatprep.subr.mxu0 0.0
    %850 = vmatpush1.msra.mxu0 0.0
    %851 = vmatprep.subr.mxu0 0.0
    %852 = vmatpush1.msra.mxu0 0.0
    %853 = vmatprep.subr.mxu0 0.0
    %854 = vmatpush1.msra.mxu0 0.0
    %855 = vmatprep.subr.mxu0 0.0
    %856 = vmatpush1.msra.mxu0 0.0
    %857 = vmatprep.subr.mxu0 0.0
    %858 = vmatpush1.msra.mxu0 0.0
    %859 = vmatprep.subr.mxu0 0.0
    %860 = vmatpush1.msra.mxu0 0.0
    %861 = vmatprep.subr.mxu0 0.0
    %862 = vmatpush1.msra.mxu0 0.0
    %863 = vmatprep.subr.mxu0 0.0
    %864 = vmatpush1.msra.mxu0 0.0
    %865 = vmatprep.subr.mxu0 0.0
    %866 = vmatpush1.msra.mxu0 0.0
    %867 = vmatprep.subr.mxu0 0.0
    %868 = vmatpush1.msra.mxu0 0.0
    %869 = vmatprep.subr.mxu0 0.0
    %870 = vmatpush1.msra.mxu0 0.0
    %871 = vmatprep.subr.mxu0 0.0
    %872 = vmatpush1.msra.mxu0 0.0
    %873 = vmatprep.subr.mxu0 0.0
    %874 = vmatpush1.msra.mxu0 0.0
    %875 = vmatprep.subr.mxu0 0.0
    %876 = vmatpush1.msra.mxu0 0.0
    %877 = vmatprep.subr.mxu0 0.0
    %878 = vmatpush1.msra.mxu0 0.0
    %879 = vmatprep.subr.mxu0 0.0
    %880 = vmatpush1.msra.mxu0 0.0
    %881 = vmatprep.subr.mxu0 0.0
    %882 = vmatpush1.msra.mxu0 0.0
    %883 = vmatprep.subr.mxu0 0.0
    %884 = vmatpush1.msra.mxu0 0.0
    %885 = vmatprep.subr.mxu0 0.0
    %886 = vmatpush1.msra.mxu0 0.0
    %887 = vmatprep.subr.mxu0 0.0
    %888 = vmatpush1.msra.mxu0 0.0
    %889 = vmatprep.subr.mxu0 0.0
    %890 = vmatpush1.msra.mxu0 0.0
    %891 = vmatprep.subr.mxu0 0.0
    %892 = vmatpush1.msra.mxu0 0.0
    %893 = vmatprep.subr.mxu0 0.0
    %894 = vmatpush1.msra.mxu0 0.0
    %895 = vmatprep.subr.mxu0 0.0
    %896 = vmatpush1.msra.mxu0 0.0
    %897 = vmatprep.subr.mxu0 0.0
    %898 = vmatpush1.msra.mxu0 0.0
    %899 = vmatprep.subr.mxu0 0.0
    %900 = vmatpush1.msra.mxu0 0.0
    %901 = vmatprep.mubr.f32.mxu0 0.0
    %902 = vmatmul.mubr.f32.gmra.mrb[0].mxu0 %v832
    %v903 = vpop.f32.mrb[0].mxu0
    %v904 = vadd.f32 %v830, %v903
    %v905 = vpop.f32.mrb[0].mxu0
    %906 = vmatprep.mubr.f32.mxu0 0.0
    %907 = vmatmul.mubr.f32.gmra.mrb[0].mxu0 %v835
    %v908 = vpop.f32.mrb[0].mxu0
    %v909 = vadd.f32 %v830, %v908
    %v910 = vpop.f32.mrb[0].mxu0
    %911 = vdwg.mxu0
    %s912 = scalar_lea.vmem %s1, 2
    %v913 = vld [vmem:[%s912] sm:$0x3]
    %s914 = scalar_lea.vmem %s2, 2
    %v915 = vld [vmem:[%s914] sm:$0x3]
    %v916 = vpack.c.bf16 %v913, %v913
    %v918 = vsel %vm143, %v916, 0
    %920 = vmatprep.subr.bf16.mxu0 0
    %921 = vmatpush1.bf16.msra.mxu0 %v824
    %922 = vmatprep.subr.bf16.mxu0 0
    %923 = vmatpush1.bf16.msra.mxu0 %v825
    %924 = vmatprep.subr.bf16.mxu0 0
    %925 = vmatpush1.bf16.msra.mxu0 0
    %926 = vmatprep.subr.bf16.mxu0 0
    %927 = vmatpush1.bf16.msra.mxu0 0
    %928 = vmatprep.subr.bf16.mxu0 0
    %929 = vmatpush1.bf16.msra.mxu0 0
    %930 = vmatprep.subr.bf16.mxu0 0
    %931 = vmatpush1.bf16.msra.mxu0 0
    %932 = vmatprep.subr.bf16.mxu0 0
    %933 = vmatpush1.bf16.msra.mxu0 0
    %934 = vmatprep.subr.bf16.mxu0 0
    %935 = vmatpush1.bf16.msra.mxu0 0
    %936 = vmatprep.subr.bf16.mxu0 0
    %937 = vmatpush1.bf16.msra.mxu0 0
    %938 = vmatprep.subr.bf16.mxu0 0
    %939 = vmatpush1.bf16.msra.mxu0 0
    %940 = vmatprep.subr.bf16.mxu0 0
    %941 = vmatpush1.bf16.msra.mxu0 0
    %942 = vmatprep.subr.bf16.mxu0 0
    %943 = vmatpush1.bf16.msra.mxu0 0
    %944 = vmatprep.subr.bf16.mxu0 0
    %945 = vmatpush1.bf16.msra.mxu0 0
    %946 = vmatprep.subr.bf16.mxu0 0
    %947 = vmatpush1.bf16.msra.mxu0 0
    %948 = vmatprep.subr.bf16.mxu0 0
    %949 = vmatpush1.bf16.msra.mxu0 0
    %950 = vmatprep.subr.bf16.mxu0 0
    %951 = vmatpush1.bf16.msra.mxu0 0
    %952 = vmatprep.mubr.bf16.mxu0 0
    %953 = vmatmul.mubr.bf16.gmra.mrb[0].mxu0 %v918
    %v954 = vpop.f32.mrb[0].mxu0
    %v955 = vadd.f32 0.0, %v954
    %v956 = vpop.f32.mrb[0].mxu0
    %v957 = vpop.f32.mrb[0].mxu0
    %v958 = vpop.f32.mrb[0].mxu0
    %959 = vdwg.mxu0
    %v960 = vadd.f32 %v904, %v955
    %v961 = vxor.u32 %v960, 2147483648
    %v962 = vmul.f32 %v961, 1.442695
    %v963 = vpow.pop %v962
    %v964 = vadd.f32 %v963, 1.0
    %v965 = vrcp.pop %v964
    %v966 = vmul.f32 1.0, %v965
    %v967 = vtanh.pop %v960
    %969 = vrot.lane.b32.xlu0 %v915, 32
    %v970 = vpop.permute.xlu0 %969
    %v972 = vmul.f32 %v966, %v970
    %974 = vrot.lane.b32.xlu0 %v967, 64
    %v975 = vpop.permute.xlu0 %974
    %v977 = vmul.f32 %v966, %v975
    %979 = vrot.lane.b32.xlu0 %v977, 32
    %v980 = vpop.permute.xlu0 %979
    %v982 = vadd.f32 %v972, %v980
    %v983 = vtanh.pop %v982
    %985 = vrot.lane.b32.xlu0 %v983, 64
    %v986 = vpop.permute.xlu0 %985
    %v988 = vmul.f32 %v966, %v986
    %v989 = vpack.c.bf16 %v988, %v988
    %991 = vrot.lane.b32.xlu0 %v989, 32
    %v992 = vpop.permute.xlu0 %991
    %v994 = vsel %vm143, %v992, 0
    %996 = vmatprep.subr.bf16.mxu0 0
    %997 = vmatpush1.bf16.msra.mxu0 %v824
    %998 = vmatprep.subr.bf16.mxu0 0
    %999 = vmatpush1.bf16.msra.mxu0 %v825
    %1000 = vmatprep.subr.bf16.mxu0 0
    %1001 = vmatpush1.bf16.msra.mxu0 0
    %1002 = vmatprep.subr.bf16.mxu0 0
    %1003 = vmatpush1.bf16.msra.mxu0 0
    %1004 = vmatprep.subr.bf16.mxu0 0
    %1005 = vmatpush1.bf16.msra.mxu0 0
    %1006 = vmatprep.subr.bf16.mxu0 0
    %1007 = vmatpush1.bf16.msra.mxu0 0
    %1008 = vmatprep.subr.bf16.mxu0 0
    %1009 = vmatpush1.bf16.msra.mxu0 0
    %1010 = vmatprep.subr.bf16.mxu0 0
    %1011 = vmatpush1.bf16.msra.mxu0 0
    %1012 = vmatprep.subr.bf16.mxu0 0
    %1013 = vmatpush1.bf16.msra.mxu0 0
    %1014 = vmatprep.subr.bf16.mxu0 0
    %1015 = vmatpush1.bf16.msra.mxu0 0
    %1016 = vmatprep.subr.bf16.mxu0 0
    %1017 = vmatpush1.bf16.msra.mxu0 0
    %1018 = vmatprep.subr.bf16.mxu0 0
    %1019 = vmatpush1.bf16.msra.mxu0 0
    %1020 = vmatprep.subr.bf16.mxu0 0
    %1021 = vmatpush1.bf16.msra.mxu0 0
    %1022 = vmatprep.subr.bf16.mxu0 0
    %1023 = vmatpush1.bf16.msra.mxu0 0
    %1024 = vmatprep.subr.bf16.mxu0 0
    %1025 = vmatpush1.bf16.msra.mxu0 0
    %1026 = vmatprep.subr.bf16.mxu0 0
    %1027 = vmatpush1.bf16.msra.mxu0 0
    %1028 = vmatprep.mubr.bf16.mxu0 0
    %1029 = vmatmul.mubr.bf16.gmra.mrb[0].mxu0 %v994
    %v1030 = vpop.f32.mrb[0].mxu0
    %v1031 = vadd.f32 0.0, %v1030
    %v1032 = vpop.f32.mrb[0].mxu0
    %v1033 = vpop.f32.mrb[0].mxu0
    %v1034 = vpop.f32.mrb[0].mxu0
    %1035 = vdwg.mxu0
    %v1037 = vrot.slane %v1031, 6
    %v1039 = vadd.f32 %v904, %v1037
    %v1040 = vxor.u32 %v1039, 2147483648
    %v1041 = vmul.f32 %v1040, 1.442695
    %v1042 = vpow.pop %v1041
    %v1043 = vadd.f32 %v1042, 1.0
    %v1044 = vrcp.pop %v1043
    %v1045 = vmul.f32 1.0, %v1044
    %v1046 = vtanh.pop %v1039
    %v1048 = vrot.slane %v982, 6
    %v1050 = vmul.f32 %v1045, %v1048
    %1052 = vrot.lane.b32.xlu0 %v1046, 64
    %v1053 = vpop.permute.xlu0 %1052
    %v1055 = vmul.f32 %v1045, %v1053
    %1057 = vrot.lane.b32.xlu0 %v1055, 32
    %v1058 = vpop.permute.xlu0 %1057
    %v1060 = vadd.f32 %v1050, %v1058
    %v1061 = vtanh.pop %v1060
    %1063 = vrot.lane.b32.xlu0 %v1061, 64
    %v1064 = vpop.permute.xlu0 %1063
    %v1066 = vmul.f32 %v1045, %v1064
    %v1067 = vpack.c.bf16 %v1066, %v1066
    %v1069 = vrot.slane %v1067, 1
    %1070 = vrot.lane.b32.xlu0 %v1069, 32
    %v1071 = vpop.permute.xlu0 %1070
    %v1073 = vsel %vm143, %v1071, 0
    %1075 = vmatprep.subr.bf16.mxu0 0
    %1076 = vmatpush1.bf16.msra.mxu0 %v824
    %1077 = vmatprep.subr.bf16.mxu0 0
    %1078 = vmatpush1.bf16.msra.mxu0 %v825
    %1079 = vmatprep.subr.bf16.mxu0 0
    %1080 = vmatpush1.bf16.msra.mxu0 0
    %1081 = vmatprep.subr.bf16.mxu0 0
    %1082 = vmatpush1.bf16.msra.mxu0 0
    %1083 = vmatprep.subr.bf16.mxu0 0
    %1084 = vmatpush1.bf16.msra.mxu0 0
    %1085 = vmatprep.subr.bf16.mxu0 0
    %1086 = vmatpush1.bf16.msra.mxu0 0
    %1087 = vmatprep.subr.bf16.mxu0 0
    %1088 = vmatpush1.bf16.msra.mxu0 0
    %1089 = vmatprep.subr.bf16.mxu0 0
    %1090 = vmatpush1.bf16.msra.mxu0 0
    %1091 = vmatprep.subr.bf16.mxu0 0
    %1092 = vmatpush1.bf16.msra.mxu0 0
    %1093 = vmatprep.subr.bf16.mxu0 0
    %1094 = vmatpush1.bf16.msra.mxu0 0
    %1095 = vmatprep.subr.bf16.mxu0 0
    %1096 = vmatpush1.bf16.msra.mxu0 0
    %1097 = vmatprep.subr.bf16.mxu0 0
    %1098 = vmatpush1.bf16.msra.mxu0 0
    %1099 = vmatprep.subr.bf16.mxu0 0
    %1100 = vmatpush1.bf16.msra.mxu0 0
    %1101 = vmatprep.subr.bf16.mxu0 0
    %1102 = vmatpush1.bf16.msra.mxu0 0
    %1103 = vmatprep.subr.bf16.mxu0 0
    %1104 = vmatpush1.bf16.msra.mxu0 0
    %1105 = vmatprep.subr.bf16.mxu0 0
    %1106 = vmatpush1.bf16.msra.mxu0 0
    %1107 = vmatprep.mubr.bf16.mxu0 0
    %1108 = vmatmul.mubr.bf16.gmra.mrb[0].mxu0 %v1073
    %v1109 = vpop.f32.mrb[0].mxu0
    %v1110 = vadd.f32 0.0, %v1109
    %v1111 = vpop.f32.mrb[0].mxu0
    %v1112 = vpop.f32.mrb[0].mxu0
    %v1113 = vpop.f32.mrb[0].mxu0
    %1114 = vdwg.mxu0
    %v1116 = vrot.slane %v1110, 4
    %v1118 = vadd.f32 %v904, %v1116
    %v1119 = vxor.u32 %v1118, 2147483648
    %v1120 = vmul.f32 %v1119, 1.442695
    %v1121 = vpow.pop %v1120
    %v1122 = vadd.f32 %v1121, 1.0
    %v1123 = vrcp.pop %v1122
    %v1124 = vmul.f32 1.0, %v1123
    %v1125 = vtanh.pop %v1118
    %v1127 = vrot.slane %v1060, 6
    %v1129 = vmul.f32 %v1124, %v1127
    %1131 = vrot.lane.b32.xlu0 %v1125, 64
    %v1132 = vpop.permute.xlu0 %1131
    %v1134 = vmul.f32 %v1124, %v1132
    %1136 = vrot.lane.b32.xlu0 %v1134, 32
    %v1137 = vpop.permute.xlu0 %1136
    %v1139 = vadd.f32 %v1129, %v1137
    %v1140 = vtanh.pop %v1139
    %1142 = vrot.lane.b32.xlu0 %v1140, 64
    %v1143 = vpop.permute.xlu0 %1142
    %v1145 = vmul.f32 %v1124, %v1143
    %v1146 = vpack.c.bf16 %v1145, %v1145
    %v1148 = vrot.slane %v1146, 2
    %1149 = vrot.lane.b32.xlu0 %v1148, 32
    %v1150 = vpop.permute.xlu0 %1149
    %v1152 = vsel %vm143, %v1150, 0
    %1154 = vmatprep.subr.bf16.mxu0 0
    %1155 = vmatpush1.bf16.msra.mxu0 %v824
    %1156 = vmatprep.subr.bf16.mxu0 0
    %1157 = vmatpush1.bf16.msra.mxu0 %v825
    %1158 = vmatprep.subr.bf16.mxu0 0
    %1159 = vmatpush1.bf16.msra.mxu0 0
    %1160 = vmatprep.subr.bf16.mxu0 0
    %1161 = vmatpush1.bf16.msra.mxu0 0
    %1162 = vmatprep.subr.bf16.mxu0 0
    %1163 = vmatpush1.bf16.msra.mxu0 0
    %1164 = vmatprep.subr.bf16.mxu0 0
    %1165 = vmatpush1.bf16.msra.mxu0 0
    %1166 = vmatprep.subr.bf16.mxu0 0
    %1167 = vmatpush1.bf16.msra.mxu0 0
    %1168 = vmatprep.subr.bf16.mxu0 0
    %1169 = vmatpush1.bf16.msra.mxu0 0
    %1170 = vmatprep.subr.bf16.mxu0 0
    %1171 = vmatpush1.bf16.msra.mxu0 0
    %1172 = vmatprep.subr.bf16.mxu0 0
    %1173 = vmatpush1.bf16.msra.mxu0 0
    %1174 = vmatprep.subr.bf16.mxu0 0
    %1175 = vmatpush1.bf16.msra.mxu0 0
    %1176 = vmatprep.subr.bf16.mxu0 0
    %1177 = vmatpush1.bf16.msra.mxu0 0
    %1178 = vmatprep.subr.bf16.mxu0 0
    %1179 = vmatpush1.bf16.msra.mxu0 0
    %1180 = vmatprep.subr.bf16.mxu0 0
    %1181 = vmatpush1.bf16.msra.mxu0 0
    %1182 = vmatprep.subr.bf16.mxu0 0
    %1183 = vmatpush1.bf16.msra.mxu0 0
    %1184 = vmatprep.subr.bf16.mxu0 0
    %1185 = vmatpush1.bf16.msra.mxu0 0
    %1186 = vmatprep.mubr.bf16.mxu0 0
    %1187 = vmatmul.mubr.bf16.gmra.mrb[0].mxu0 %v1152
    %v1188 = vpop.f32.mrb[0].mxu0
    %v1189 = vadd.f32 0.0, %v1188
    %v1190 = vpop.f32.mrb[0].mxu0
    %v1191 = vpop.f32.mrb[0].mxu0
    %v1192 = vpop.f32.mrb[0].mxu0
    %1193 = vdwg.mxu0
    %v1195 = vrot.slane %v1189, 2
    %v1197 = vadd.f32 %v904, %v1195
    %v1198 = vxor.u32 %v1197, 2147483648
    %v1199 = vmul.f32 %v1198, 1.442695
    %v1200 = vpow.pop %v1199
    %v1201 = vadd.f32 %v1200, 1.0
    %v1202 = vrcp.pop %v1201
    %v1203 = vmul.f32 1.0, %v1202
    %v1204 = vtanh.pop %v1197
    %v1206 = vrot.slane %v1139, 6
    %v1208 = vmul.f32 %v1203, %v1206
    %1210 = vrot.lane.b32.xlu0 %v1204, 64
    %v1211 = vpop.permute.xlu0 %1210
    %v1213 = vmul.f32 %v1203, %v1211
    %1215 = vrot.lane.b32.xlu0 %v1213, 32
    %v1216 = vpop.permute.xlu0 %1215
    %v1218 = vadd.f32 %v1208, %v1216
    %v1219 = vtanh.pop %v1218
    %1221 = vrot.lane.b32.xlu0 %v1219, 64
    %v1222 = vpop.permute.xlu0 %1221
    %v1224 = vmul.f32 %v1203, %v1222
    %v1225 = vpack.c.bf16 %v1224, %v1224
    %v1227 = vrot.slane %v1225, 3
    %1228 = vrot.lane.b32.xlu0 %v1227, 32
    %v1229 = vpop.permute.xlu0 %1228
    %v1231 = vsel %vm143, %v1229, 0
    %1233 = vmatprep.subr.bf16.mxu0 0
    %1234 = vmatpush1.bf16.msra.mxu0 %v824
    %1235 = vmatprep.subr.bf16.mxu0 0
    %1236 = vmatpush1.bf16.msra.mxu0 %v825
    %1237 = vmatprep.subr.bf16.mxu0 0
    %1238 = vmatpush1.bf16.msra.mxu0 0
    %1239 = vmatprep.subr.bf16.mxu0 0
    %1240 = vmatpush1.bf16.msra.mxu0 0
    %1241 = vmatprep.subr.bf16.mxu0 0
    %1242 = vmatpush1.bf16.msra.mxu0 0
    %1243 = vmatprep.subr.bf16.mxu0 0
    %1244 = vmatpush1.bf16.msra.mxu0 0
    %1245 = vmatprep.subr.bf16.mxu0 0
    %1246 = vmatpush1.bf16.msra.mxu0 0
    %1247 = vmatprep.subr.bf16.mxu0 0
    %1248 = vmatpush1.bf16.msra.mxu0 0
    %1249 = vmatprep.subr.bf16.mxu0 0
    %1250 = vmatpush1.bf16.msra.mxu0 0
    %1251 = vmatprep.subr.bf16.mxu0 0
    %1252 = vmatpush1.bf16.msra.mxu0 0
    %1253 = vmatprep.subr.bf16.mxu0 0
    %1254 = vmatpush1.bf16.msra.mxu0 0
    %1255 = vmatprep.subr.bf16.mxu0 0
    %1256 = vmatpush1.bf16.msra.mxu0 0
    %1257 = vmatprep.subr.bf16.mxu0 0
    %1258 = vmatpush1.bf16.msra.mxu0 0
    %1259 = vmatprep.subr.bf16.mxu0 0
    %1260 = vmatpush1.bf16.msra.mxu0 0
    %1261 = vmatprep.subr.bf16.mxu0 0
    %1262 = vmatpush1.bf16.msra.mxu0 0
    %1263 = vmatprep.subr.bf16.mxu0 0
    %1264 = vmatpush1.bf16.msra.mxu0 0
    %1265 = vmatprep.mubr.bf16.mxu0 0
    %1266 = vmatmul.mubr.bf16.gmra.mrb[0].mxu0 %v1231
    %v1267 = vpop.f32.mrb[0].mxu0
    %v1268 = vadd.f32 0.0, %v1267
    %v1269 = vpop.f32.mrb[0].mxu0
    %v1270 = vpop.f32.mrb[0].mxu0
    %v1271 = vpop.f32.mrb[0].mxu0
    %1272 = vdwg.mxu0
    %v1273 = vadd.f32 %v909, %v1268
    %v1274 = vxor.u32 %v1273, 2147483648
    %v1275 = vmul.f32 %v1274, 1.442695
    %v1276 = vpow.pop %v1275
    %v1277 = vadd.f32 %v1276, 1.0
    %v1278 = vrcp.pop %v1277
    %v1279 = vmul.f32 1.0, %v1278
    %v1280 = vtanh.pop %v1273
    %v1282 = vrot.slane %v1218, 6
    %v1284 = vmul.f32 %v1279, %v1282
    %1286 = vrot.lane.b32.xlu0 %v1280, 64
    %v1287 = vpop.permute.xlu0 %1286
    %v1289 = vmul.f32 %v1279, %v1287
    %1291 = vrot.lane.b32.xlu0 %v1289, 32
    %v1292 = vpop.permute.xlu0 %1291
    %v1294 = vadd.f32 %v1284, %v1292
    %v1295 = vtanh.pop %v1294
    %1297 = vrot.lane.b32.xlu0 %v1295, 64
    %v1298 = vpop.permute.xlu0 %1297
    %v1300 = vmul.f32 %v1279, %v1298
    %v1301 = vpack.c.bf16 %v1300, %v1300
    %1303 = vrot.lane.b32.xlu0 %v1301, 32
    %v1304 = vpop.permute.xlu0 %1303
    %v1306 = vsel %vm143, %v1304, 0
    %1308 = vmatprep.subr.bf16.mxu0 0
    %1309 = vmatpush1.bf16.msra.mxu0 %v824
    %1310 = vmatprep.subr.bf16.mxu0 0
    %1311 = vmatpush1.bf16.msra.mxu0 %v825
    %1312 = vmatprep.subr.bf16.mxu0 0
    %1313 = vmatpush1.bf16.msra.mxu0 0
    %1314 = vmatprep.subr.bf16.mxu0 0
    %1315 = vmatpush1.bf16.msra.mxu0 0
    %1316 = vmatprep.subr.bf16.mxu0 0
    %1317 = vmatpush1.bf16.msra.mxu0 0
    %1318 = vmatprep.subr.bf16.mxu0 0
    %1319 = vmatpush1.bf16.msra.mxu0 0
    %1320 = vmatprep.subr.bf16.mxu0 0
    %1321 = vmatpush1.bf16.msra.mxu0 0
    %1322 = vmatprep.subr.bf16.mxu0 0
    %1323 = vmatpush1.bf16.msra.mxu0 0
    %1324 = vmatprep.subr.bf16.mxu0 0
    %1325 = vmatpush1.bf16.msra.mxu0 0
    %1326 = vmatprep.subr.bf16.mxu0 0
    %1327 = vmatpush1.bf16.msra.mxu0 0
    %1328 = vmatprep.subr.bf16.mxu0 0
    %1329 = vmatpush1.bf16.msra.mxu0 0
    %1330 = vmatprep.subr.bf16.mxu0 0
    %1331 = vmatpush1.bf16.msra.mxu0 0
    %1332 = vmatprep.subr.bf16.mxu0 0
    %1333 = vmatpush1.bf16.msra.mxu0 0
    %1334 = vmatprep.subr.bf16.mxu0 0
    %1335 = vmatpush1.bf16.msra.mxu0 0
    %1336 = vmatprep.subr.bf16.mxu0 0
    %1337 = vmatpush1.bf16.msra.mxu0 0
    %1338 = vmatprep.subr.bf16.mxu0 0
    %1339 = vmatpush1.bf16.msra.mxu0 0
    %1340 = vmatprep.mubr.bf16.mxu0 0
    %1341 = vmatmul.mubr.bf16.gmra.mrb[0].mxu0 %v1306
    %v1342 = vpop.f32.mrb[0].mxu0
    %v1343 = vadd.f32 0.0, %v1342
    %v1344 = vpop.f32.mrb[0].mxu0
    %v1345 = vpop.f32.mrb[0].mxu0
    %v1346 = vpop.f32.mrb[0].mxu0
    %1347 = vdwg.mxu0
    %v1349 = vrot.slane %v1343, 6
    %v1351 = vadd.f32 %v909, %v1349
    %v1352 = vxor.u32 %v1351, 2147483648
    %v1353 = vmul.f32 %v1352, 1.442695
    %v1354 = vpow.pop %v1353
    %v1355 = vadd.f32 %v1354, 1.0
    %v1356 = vrcp.pop %v1355
    %v1357 = vmul.f32 1.0, %v1356
    %v1358 = vtanh.pop %v1351
    %v1360 = vrot.slane %v1294, 6
    %v1362 = vmul.f32 %v1357, %v1360
    %1364 = vrot.lane.b32.xlu0 %v1358, 64
    %v1365 = vpop.permute.xlu0 %1364
    %v1367 = vmul.f32 %v1357, %v1365
    %1369 = vrot.lane.b32.xlu0 %v1367, 32
    %v1370 = vpop.permute.xlu0 %1369
    %v1372 = vadd.f32 %v1362, %v1370
    %v1373 = vtanh.pop %v1372
    %1375 = vrot.lane.b32.xlu0 %v1373, 64
    %v1376 = vpop.permute.xlu0 %1375
    %v1378 = vmul.f32 %v1357, %v1376
    %v1379 = vpack.c.bf16 %v1378, %v1378
    %v1381 = vrot.slane %v1379, 1
    %1382 = vrot.lane.b32.xlu0 %v1381, 32
    %v1383 = vpop.permute.xlu0 %1382
    %v1385 = vsel %vm143, %v1383, 0
    %1387 = vmatprep.subr.bf16.mxu0 0
    %1388 = vmatpush1.bf16.msra.mxu0 %v824
    %1389 = vmatprep.subr.bf16.mxu0 0
    %1390 = vmatpush1.bf16.msra.mxu0 %v825
    %1391 = vmatprep.subr.bf16.mxu0 0
    %1392 = vmatpush1.bf16.msra.mxu0 0
    %1393 = vmatprep.subr.bf16.mxu0 0
    %1394 = vmatpush1.bf16.msra.mxu0 0
    %1395 = vmatprep.subr.bf16.mxu0 0
    %1396 = vmatpush1.bf16.msra.mxu0 0
    %1397 = vmatprep.subr.bf16.mxu0 0
    %1398 = vmatpush1.bf16.msra.mxu0 0
    %1399 = vmatprep.subr.bf16.mxu0 0
    %1400 = vmatpush1.bf16.msra.mxu0 0
    %1401 = vmatprep.subr.bf16.mxu0 0
    %1402 = vmatpush1.bf16.msra.mxu0 0
    %1403 = vmatprep.subr.bf16.mxu0 0
    %1404 = vmatpush1.bf16.msra.mxu0 0
    %1405 = vmatprep.subr.bf16.mxu0 0
    %1406 = vmatpush1.bf16.msra.mxu0 0
    %1407 = vmatprep.subr.bf16.mxu0 0
    %1408 = vmatpush1.bf16.msra.mxu0 0
    %1409 = vmatprep.subr.bf16.mxu0 0
    %1410 = vmatpush1.bf16.msra.mxu0 0
    %1411 = vmatprep.subr.bf16.mxu0 0
    %1412 = vmatpush1.bf16.msra.mxu0 0
    %1413 = vmatprep.subr.bf16.mxu0 0
    %1414 = vmatpush1.bf16.msra.mxu0 0
    %1415 = vmatprep.subr.bf16.mxu0 0
    %1416 = vmatpush1.bf16.msra.mxu0 0
    %1417 = vmatprep.subr.bf16.mxu0 0
    %1418 = vmatpush1.bf16.msra.mxu0 0
    %1419 = vmatprep.mubr.bf16.mxu0 0
    %1420 = vmatmul.mubr.bf16.gmra.mrb[0].mxu0 %v1385
    %v1421 = vpop.f32.mrb[0].mxu0
    %v1422 = vadd.f32 0.0, %v1421
    %v1423 = vpop.f32.mrb[0].mxu0
    %v1424 = vpop.f32.mrb[0].mxu0
    %v1425 = vpop.f32.mrb[0].mxu0
    %1426 = vdwg.mxu0
    %v1428 = vrot.slane %v1422, 4
    %v1430 = vadd.f32 %v909, %v1428
    %v1431 = vxor.u32 %v1430, 2147483648
    %v1432 = vmul.f32 %v1431, 1.442695
    %v1433 = vpow.pop %v1432
    %v1434 = vadd.f32 %v1433, 1.0
    %v1435 = vrcp.pop %v1434
    %v1436 = vmul.f32 1.0, %v1435
    %v1437 = vtanh.pop %v1430
    %v1439 = vrot.slane %v1372, 6
    %v1441 = vmul.f32 %v1436, %v1439
    %1443 = vrot.lane.b32.xlu0 %v1437, 64
    %v1444 = vpop.permute.xlu0 %1443
    %v1446 = vmul.f32 %v1436, %v1444
    %1448 = vrot.lane.b32.xlu0 %v1446, 32
    %v1449 = vpop.permute.xlu0 %1448
    %v1451 = vadd.f32 %v1441, %v1449
    %v1452 = vtanh.pop %v1451
    %1454 = vrot.lane.b32.xlu0 %v1452, 64
    %v1455 = vpop.permute.xlu0 %1454
    %v1457 = vmul.f32 %v1436, %v1455
    %v1458 = vpack.c.bf16 %v1457, %v1457
    %v1460 = vrot.slane %v1458, 2
    %1461 = vrot.lane.b32.xlu0 %v1460, 32
    %v1462 = vpop.permute.xlu0 %1461
    %v1464 = vsel %vm143, %v1462, 0
    %1466 = vmatprep.subr.bf16.mxu0 0
    %1467 = vmatpush1.bf16.msra.mxu0 %v824
    %1468 = vmatprep.subr.bf16.mxu0 0
    %1469 = vmatpush1.bf16.msra.mxu0 %v825
    %1470 = vmatprep.subr.bf16.mxu0 0
    %1471 = vmatpush1.bf16.msra.mxu0 0
    %1472 = vmatprep.subr.bf16.mxu0 0
    %1473 = vmatpush1.bf16.msra.mxu0 0
    %1474 = vmatprep.subr.bf16.mxu0 0
    %1475 = vmatpush1.bf16.msra.mxu0 0
    %1476 = vmatprep.subr.bf16.mxu0 0
    %1477 = vmatpush1.bf16.msra.mxu0 0
    %1478 = vmatprep.subr.bf16.mxu0 0
    %1479 = vmatpush1.bf16.msra.mxu0 0
    %1480 = vmatprep.subr.bf16.mxu0 0
    %1481 = vmatpush1.bf16.msra.mxu0 0
    %1482 = vmatprep.subr.bf16.mxu0 0
    %1483 = vmatpush1.bf16.msra.mxu0 0
    %1484 = vmatprep.subr.bf16.mxu0 0
    %1485 = vmatpush1.bf16.msra.mxu0 0
    %1486 = vmatprep.subr.bf16.mxu0 0
    %1487 = vmatpush1.bf16.msra.mxu0 0
    %1488 = vmatprep.subr.bf16.mxu0 0
    %1489 = vmatpush1.bf16.msra.mxu0 0
    %1490 = vmatprep.subr.bf16.mxu0 0
    %1491 = vmatpush1.bf16.msra.mxu0 0
    %1492 = vmatprep.subr.bf16.mxu0 0
    %1493 = vmatpush1.bf16.msra.mxu0 0
    %1494 = vmatprep.subr.bf16.mxu0 0
    %1495 = vmatpush1.bf16.msra.mxu0 0
    %1496 = vmatprep.subr.bf16.mxu0 0
    %1497 = vmatpush1.bf16.msra.mxu0 0
    %1498 = vmatprep.mubr.bf16.mxu0 0
    %1499 = vmatmul.mubr.bf16.gmra.mrb[0].mxu0 %v1464
    %v1500 = vpop.f32.mrb[0].mxu0
    %v1501 = vadd.f32 0.0, %v1500
    %v1502 = vpop.f32.mrb[0].mxu0
    %v1503 = vpop.f32.mrb[0].mxu0
    %v1504 = vpop.f32.mrb[0].mxu0
    %1505 = vdwg.mxu0
    %v1507 = vrot.slane %v1501, 2
    %v1509 = vadd.f32 %v909, %v1507
    %v1510 = vxor.u32 %v1509, 2147483648
    %v1511 = vmul.f32 %v1510, 1.442695
    %v1512 = vpow.pop %v1511
    %v1513 = vadd.f32 %v1512, 1.0
    %v1514 = vrcp.pop %v1513
    %v1515 = vmul.f32 1.0, %v1514
    %v1516 = vtanh.pop %v1509
    %v1518 = vrot.slane %v1451, 6
    %v1520 = vmul.f32 %v1515, %v1518
    %1522 = vrot.lane.b32.xlu0 %v1516, 64
    %v1523 = vpop.permute.xlu0 %1522
    %v1525 = vmul.f32 %v1515, %v1523
    %1527 = vrot.lane.b32.xlu0 %v1525, 32
    %v1528 = vpop.permute.xlu0 %1527
    %v1530 = vadd.f32 %v1520, %v1528
    %v1531 = vtanh.pop %v1530
    %1533 = vrot.lane.b32.xlu0 %v1531, 64
    %v1534 = vpop.permute.xlu0 %1533
    %v1536 = vmul.f32 %v1515, %v1534
    %1538 = vrot.lane.b32.xlu0 %v1536, 32
    %v1539 = vpop.permute.xlu0 %1538
    %s1541 = scalar_lea.vmem [#allocation7], 2
    %1542 = vst.msk [vmem:[%s1541 - $0x6] sm:$0xc0] %vm474, %v1539
    %1544 = vrot.lane.b32.xlu0 %v1530, 96
    %v1545 = vpop.permute.xlu0 %1544
    %s1547 = scalar_lea.vmem [#allocation9], 2
    %1548 = vst.msk [vmem:[%s1547 - $0x6] sm:$0xc0] %vm474, %v1545
    %v1549 = vld [vmem:[#allocation3 + $0x78] sm:$0xff]
    %v1550 = vld [vmem:[#allocation3 + $0x80] sm:$0xff]
    %v1551 = vld [vmem:[#allocation3 + $0x88] sm:$0xff]
    %v1552 = vld [vmem:[#allocation3 + $0x90] sm:$0xff]
    %v1553 = vld [vmem:[#allocation3 + $0x98] sm:$0xff]
    %v1554 = vld [vmem:[#allocation3 + $0xa0] sm:$0xff]
    %v1555 = vld [vmem:[%s3] sm:$0x3]
    %vm1556 = vcmask 31744
    %v1558 = vsel %vm1556, %v1555, 0
    %vm1560 = vcmask 1043456
    %v1562 = vsel %vm1560, %v1553, 0
    %1564 = vmatprep.subr.mxu0 0.0
    %1565 = vmatpush1.msra.mxu0 %v1562
    %1566 = vmatprep.subr.mxu0 0.0
    %1567 = vmatpush1.msra.mxu0 0.0
    %1568 = vmatprep.subr.mxu0 0.0
    %1569 = vmatpush1.msra.mxu0 0.0
    %1570 = vmatprep.subr.mxu0 0.0
    %1571 = vmatpush1.msra.mxu0 0.0
    %1572 = vmatprep.subr.mxu0 0.0
    %1573 = vmatpush1.msra.mxu0 0.0
    %1574 = vmatprep.subr.mxu0 0.0
    %1575 = vmatpush1.msra.mxu0 0.0
    %1576 = vmatprep.subr.mxu0 0.0
    %1577 = vmatpush1.msra.mxu0 0.0
    %1578 = vmatprep.subr.mxu0 0.0
    %1579 = vmatpush1.msra.mxu0 0.0
    %1580 = vmatprep.subr.mxu0 0.0
    %1581 = vmatpush1.msra.mxu0 0.0
    %1582 = vmatprep.subr.mxu0 0.0
    %1583 = vmatpush1.msra.mxu0 0.0
    %1584 = vmatprep.subr.mxu0 0.0
    %1585 = vmatpush1.msra.mxu0 0.0
    %1586 = vmatprep.subr.mxu0 0.0
    %1587 = vmatpush1.msra.mxu0 0.0
    %1588 = vmatprep.subr.mxu0 0.0
    %1589 = vmatpush1.msra.mxu0 0.0
    %1590 = vmatprep.subr.mxu0 0.0
    %1591 = vmatpush1.msra.mxu0 0.0
    %1592 = vmatprep.subr.mxu0 0.0
    %1593 = vmatpush1.msra.mxu0 0.0
    %1594 = vmatprep.subr.mxu0 0.0
    %1595 = vmatpush1.msra.mxu0 0.0
    %1596 = vmatprep.subr.mxu0 0.0
    %1597 = vmatpush1.msra.mxu0 0.0
    %1598 = vmatprep.subr.mxu0 0.0
    %1599 = vmatpush1.msra.mxu0 0.0
    %1600 = vmatprep.subr.mxu0 0.0
    %1601 = vmatpush1.msra.mxu0 0.0
    %1602 = vmatprep.subr.mxu0 0.0
    %1603 = vmatpush1.msra.mxu0 0.0
    %1604 = vmatprep.subr.mxu0 0.0
    %1605 = vmatpush1.msra.mxu0 0.0
    %1606 = vmatprep.subr.mxu0 0.0
    %1607 = vmatpush1.msra.mxu0 0.0
    %1608 = vmatprep.subr.mxu0 0.0
    %1609 = vmatpush1.msra.mxu0 0.0
    %1610 = vmatprep.subr.mxu0 0.0
    %1611 = vmatpush1.msra.mxu0 0.0
    %1612 = vmatprep.subr.mxu0 0.0
    %1613 = vmatpush1.msra.mxu0 0.0
    %1614 = vmatprep.subr.mxu0 0.0
    %1615 = vmatpush1.msra.mxu0 0.0
    %1616 = vmatprep.subr.mxu0 0.0
    %1617 = vmatpush1.msra.mxu0 0.0
    %1618 = vmatprep.subr.mxu0 0.0
    %1619 = vmatpush1.msra.mxu0 0.0
    %1620 = vmatprep.subr.mxu0 0.0
    %1621 = vmatpush1.msra.mxu0 0.0
    %1622 = vmatprep.subr.mxu0 0.0
    %1623 = vmatpush1.msra.mxu0 0.0
    %1624 = vmatprep.subr.mxu0 0.0
    %1625 = vmatpush1.msra.mxu0 0.0
    %1626 = vmatprep.subr.mxu0 0.0
    %1627 = vmatpush1.msra.mxu0 0.0
    %1628 = vmatprep.mubr.f32.mxu0 0.0
    %1629 = vmatmul.mubr.f32.gmra.mrb[0].mxu0 %v1558
    %v1630 = vpop.f32.mrb[0].mxu0
    %v1631 = vadd.f32 0.0, %v1630
    %v1632 = vpop.f32.mrb[0].mxu0
    %1633 = vdwg.mxu0
    %v1634 = vrot.slane %v1536, 6
    %1635 = vrot.lane.b32.xlu0 %v1634, 32
    %v1636 = vpop.permute.xlu0 %1635
    %v1637 = vsel %vm143, %v1636, 0
    %1639 = vmatprep.subr.mxu0 0.0
    %1640 = vmatpush1.msra.mxu0 %v1549
    %1641 = vmatprep.subr.mxu0 0.0
    %1642 = vmatpush1.msra.mxu0 %v1550
    %1643 = vmatprep.subr.mxu0 0.0
    %1644 = vmatpush1.msra.mxu0 %v1551
    %1645 = vmatprep.subr.mxu0 0.0
    %1646 = vmatpush1.msra.mxu0 %v1552
    %1647 = vmatprep.subr.mxu0 0.0
    %1648 = vmatpush1.msra.mxu0 0.0
    %1649 = vmatprep.subr.mxu0 0.0
    %1650 = vmatpush1.msra.mxu0 0.0
    %1651 = vmatprep.subr.mxu0 0.0
    %1652 = vmatpush1.msra.mxu0 0.0
    %1653 = vmatprep.subr.mxu0 0.0
    %1654 = vmatpush1.msra.mxu0 0.0
    %1655 = vmatprep.subr.mxu0 0.0
    %1656 = vmatpush1.msra.mxu0 0.0
    %1657 = vmatprep.subr.mxu0 0.0
    %1658 = vmatpush1.msra.mxu0 0.0
    %1659 = vmatprep.subr.mxu0 0.0
    %1660 = vmatpush1.msra.mxu0 0.0
    %1661 = vmatprep.subr.mxu0 0.0
    %1662 = vmatpush1.msra.mxu0 0.0
    %1663 = vmatprep.subr.mxu0 0.0
    %1664 = vmatpush1.msra.mxu0 0.0
    %1665 = vmatprep.subr.mxu0 0.0
    %1666 = vmatpush1.msra.mxu0 0.0
    %1667 = vmatprep.subr.mxu0 0.0
    %1668 = vmatpush1.msra.mxu0 0.0
    %1669 = vmatprep.subr.mxu0 0.0
    %1670 = vmatpush1.msra.mxu0 0.0
    %1671 = vmatprep.subr.mxu0 0.0
    %1672 = vmatpush1.msra.mxu0 0.0
    %1673 = vmatprep.subr.mxu0 0.0
    %1674 = vmatpush1.msra.mxu0 0.0
    %1675 = vmatprep.subr.mxu0 0.0
    %1676 = vmatpush1.msra.mxu0 0.0
    %1677 = vmatprep.subr.mxu0 0.0
    %1678 = vmatpush1.msra.mxu0 0.0
    %1679 = vmatprep.subr.mxu0 0.0
    %1680 = vmatpush1.msra.mxu0 0.0
    %1681 = vmatprep.subr.mxu0 0.0
    %1682 = vmatpush1.msra.mxu0 0.0
    %1683 = vmatprep.subr.mxu0 0.0
    %1684 = vmatpush1.msra.mxu0 0.0
    %1685 = vmatprep.subr.mxu0 0.0
    %1686 = vmatpush1.msra.mxu0 0.0
    %1687 = vmatprep.subr.mxu0 0.0
    %1688 = vmatpush1.msra.mxu0 0.0
    %1689 = vmatprep.subr.mxu0 0.0
    %1690 = vmatpush1.msra.mxu0 0.0
    %1691 = vmatprep.subr.mxu0 0.0
    %1692 = vmatpush1.msra.mxu0 0.0
    %1693 = vmatprep.subr.mxu0 0.0
    %1694 = vmatpush1.msra.mxu0 0.0
    %1695 = vmatprep.subr.mxu0 0.0
    %1696 = vmatpush1.msra.mxu0 0.0
    %1697 = vmatprep.subr.mxu0 0.0
    %1698 = vmatpush1.msra.mxu0 0.0
    %1699 = vmatprep.subr.mxu0 0.0
    %1700 = vmatpush1.msra.mxu0 0.0
    %1701 = vmatprep.subr.mxu0 0.0
    %1702 = vmatpush1.msra.mxu0 0.0
    %1703 = vmatprep.mubr.f32.mxu0 0.0
    %1704 = vmatmul.mubr.f32.gmra.mrb[0].mxu0 %v1637
    %v1705 = vpop.f32.mrb[0].mxu0
    %v1706 = vadd.f32 %v1631, %v1705
    %v1707 = vpop.f32.mrb[0].mxu0
    %1708 = vdwg.mxu0
    %v1709 = vlaneseq
    %v1710 = vshrl.u32 %v1709, 7
    %v1711 = vsub.s32 0, %v1710
    %v1712 = vrot.slane %v1554, %v1711
    %v1713 = vadd.f32 %v1706, %v1712
    %v1714 = vld [vmem:[#allocation3 + $0xa8] sm:$0xff]
    %v1715 = vld [vmem:[#allocation3 + $0xb0] sm:$0xff]
    %v1716 = vld [vmem:[#allocation3 + $0xb8] sm:$0xff]
    %v1717 = vld [vmem:[#allocation3 + $0xc0] sm:$0xff]
    %v1718 = vld [vmem:[#allocation3 + $0xc8] sm:$0xff]
    %v1719 = vlaneseq
    %v1720 = vshrl.u32 %v1719, 7
    %v1721 = vsub.s32 0, %v1720
    %v1722 = vrot.slane %v1718, %v1721
    %v1724 = vsel %vm143, %v1713, 0
    %1726 = vmatprep.subr.mxu0 0.0
    %1727 = vmatpush1.msra.mxu0 %v1714
    %1728 = vmatprep.subr.mxu0 0.0
    %1729 = vmatpush1.msra.mxu0 %v1715
    %1730 = vmatprep.subr.mxu0 0.0
    %1731 = vmatpush1.msra.mxu0 %v1716
    %1732 = vmatprep.subr.mxu0 0.0
    %1733 = vmatpush1.msra.mxu0 %v1717
    %1734 = vmatprep.subr.mxu0 0.0
    %1735 = vmatpush1.msra.mxu0 0.0
    %1736 = vmatprep.subr.mxu0 0.0
    %1737 = vmatpush1.msra.mxu0 0.0
    %1738 = vmatprep.subr.mxu0 0.0
    %1739 = vmatpush1.msra.mxu0 0.0
    %1740 = vmatprep.subr.mxu0 0.0
    %1741 = vmatpush1.msra.mxu0 0.0
    %1742 = vmatprep.subr.mxu0 0.0
    %1743 = vmatpush1.msra.mxu0 0.0
    %1744 = vmatprep.subr.mxu0 0.0
    %1745 = vmatpush1.msra.mxu0 0.0
    %1746 = vmatprep.subr.mxu0 0.0
    %1747 = vmatpush1.msra.mxu0 0.0
    %1748 = vmatprep.subr.mxu0 0.0
    %1749 = vmatpush1.msra.mxu0 0.0
    %1750 = vmatprep.subr.mxu0 0.0
    %1751 = vmatpush1.msra.mxu0 0.0
    %1752 = vmatprep.subr.mxu0 0.0
    %1753 = vmatpush1.msra.mxu0 0.0
    %1754 = vmatprep.subr.mxu0 0.0
    %1755 = vmatpush1.msra.mxu0 0.0
    %1756 = vmatprep.subr.mxu0 0.0
    %1757 = vmatpush1.msra.mxu0 0.0
    %1758 = vmatprep.subr.mxu0 0.0
    %1759 = vmatpush1.msra.mxu0 0.0
    %1760 = vmatprep.subr.mxu0 0.0
    %1761 = vmatpush1.msra.mxu0 0.0
    %1762 = vmatprep.subr.mxu0 0.0
    %1763 = vmatpush1.msra.mxu0 0.0
    %1764 = vmatprep.subr.mxu0 0.0
    %1765 = vmatpush1.msra.mxu0 0.0
    %1766 = vmatprep.subr.mxu0 0.0
    %1767 = vmatpush1.msra.mxu0 0.0
    %1768 = vmatprep.subr.mxu0 0.0
    %1769 = vmatpush1.msra.mxu0 0.0
    %1770 = vmatprep.subr.mxu0 0.0
    %1771 = vmatpush1.msra.mxu0 0.0
    %1772 = vmatprep.subr.mxu0 0.0
    %1773 = vmatpush1.msra.mxu0 0.0
    %1774 = vmatprep.subr.mxu0 0.0
    %1775 = vmatpush1.msra.mxu0 0.0
    %1776 = vmatprep.subr.mxu0 0.0
    %1777 = vmatpush1.msra.mxu0 0.0
    %1778 = vmatprep.subr.mxu0 0.0
    %1779 = vmatpush1.msra.mxu0 0.0
    %1780 = vmatprep.subr.mxu0 0.0
    %1781 = vmatpush1.msra.mxu0 0.0
    %1782 = vmatprep.subr.mxu0 0.0
    %1783 = vmatpush1.msra.mxu0 0.0
    %1784 = vmatprep.subr.mxu0 0.0
    %1785 = vmatpush1.msra.mxu0 0.0
    %1786 = vmatprep.subr.mxu0 0.0
    %1787 = vmatpush1.msra.mxu0 0.0
    %1788 = vmatprep.subr.mxu0 0.0
    %1789 = vmatpush1.msra.mxu0 0.0
    %1790 = vmatprep.mubr.f32.mxu0 0.0
    %1791 = vmatmul.mubr.f32.gmra.mrb[0].mxu0 %v1724
    %v1792 = vpop.f32.mrb[0].mxu0
    %v1793 = vadd.f32 %v1722, %v1792
    %v1794 = vpop.f32.mrb[0].mxu0
    %1795 = vdwg.mxu0
    %v1796 = vld [vmem:[#allocation3 + $0xd0] sm:$0xff]
    %v1797 = vld [vmem:[#allocation3 + $0xd8] sm:$0xff]
    %v1798 = vld [vmem:[#allocation3 + $0xe0] sm:$0xff]
    %v1799 = vld [vmem:[#allocation3 + $0xe8] sm:$0xff]
    %v1800 = vld [vmem:[#allocation3 + $0xf0] sm:$0xff]
    %v1801 = vlaneseq
    %v1802 = vshrl.u32 %v1801, 7
    %v1803 = vsub.s32 0, %v1802
    %v1804 = vrot.slane %v1800, %v1803
    %v1806 = vsel %vm143, %v1793, 0
    %1808 = vmatprep.subr.mxu0 0.0
    %1809 = vmatpush1.msra.mxu0 %v1796
    %1810 = vmatprep.subr.mxu0 0.0
    %1811 = vmatpush1.msra.mxu0 %v1797
    %1812 = vmatprep.subr.mxu0 0.0
    %1813 = vmatpush1.msra.mxu0 %v1798
    %1814 = vmatprep.subr.mxu0 0.0
    %1815 = vmatpush1.msra.mxu0 %v1799
    %1816 = vmatprep.subr.mxu0 0.0
    %1817 = vmatpush1.msra.mxu0 0.0
    %1818 = vmatprep.subr.mxu0 0.0
    %1819 = vmatpush1.msra.mxu0 0.0
    %1820 = vmatprep.subr.mxu0 0.0
    %1821 = vmatpush1.msra.mxu0 0.0
    %1822 = vmatprep.subr.mxu0 0.0
    %1823 = vmatpush1.msra.mxu0 0.0
    %1824 = vmatprep.subr.mxu0 0.0
    %1825 = vmatpush1.msra.mxu0 0.0
    %1826 = vmatprep.subr.mxu0 0.0
    %1827 = vmatpush1.msra.mxu0 0.0
    %1828 = vmatprep.subr.mxu0 0.0
    %1829 = vmatpush1.msra.mxu0 0.0
    %1830 = vmatprep.subr.mxu0 0.0
    %1831 = vmatpush1.msra.mxu0 0.0
    %1832 = vmatprep.subr.mxu0 0.0
    %1833 = vmatpush1.msra.mxu0 0.0
    %1834 = vmatprep.subr.mxu0 0.0
    %1835 = vmatpush1.msra.mxu0 0.0
    %1836 = vmatprep.subr.mxu0 0.0
    %1837 = vmatpush1.msra.mxu0 0.0
    %1838 = vmatprep.subr.mxu0 0.0
    %1839 = vmatpush1.msra.mxu0 0.0
    %1840 = vmatprep.subr.mxu0 0.0
    %1841 = vmatpush1.msra.mxu0 0.0
    %1842 = vmatprep.subr.mxu0 0.0
    %1843 = vmatpush1.msra.mxu0 0.0
    %1844 = vmatprep.subr.mxu0 0.0
    %1845 = vmatpush1.msra.mxu0 0.0
    %1846 = vmatprep.subr.mxu0 0.0
    %1847 = vmatpush1.msra.mxu0 0.0
    %1848 = vmatprep.subr.mxu0 0.0
    %1849 = vmatpush1.msra.mxu0 0.0
    %1850 = vmatprep.subr.mxu0 0.0
    %1851 = vmatpush1.msra.mxu0 0.0
    %1852 = vmatprep.subr.mxu0 0.0
    %1853 = vmatpush1.msra.mxu0 0.0
    %1854 = vmatprep.subr.mxu0 0.0
    %1855 = vmatpush1.msra.mxu0 0.0
    %1856 = vmatprep.subr.mxu0 0.0
    %1857 = vmatpush1.msra.mxu0 0.0
    %1858 = vmatprep.subr.mxu0 0.0
    %1859 = vmatpush1.msra.mxu0 0.0
    %1860 = vmatprep.subr.mxu0 0.0
    %1861 = vmatpush1.msra.mxu0 0.0
    %1862 = vmatprep.subr.mxu0 0.0
    %1863 = vmatpush1.msra.mxu0 0.0
    %1864 = vmatprep.subr.mxu0 0.0
    %1865 = vmatpush1.msra.mxu0 0.0
    %1866 = vmatprep.subr.mxu0 0.0
    %1867 = vmatpush1.msra.mxu0 0.0
    %1868 = vmatprep.subr.mxu0 0.0
    %1869 = vmatpush1.msra.mxu0 0.0
    %1870 = vmatprep.subr.mxu0 0.0
    %1871 = vmatpush1.msra.mxu0 0.0
    %1872 = vmatprep.mubr.f32.mxu0 0.0
    %1873 = vmatmul.mubr.f32.gmra.mrb[0].mxu0 %v1806
    %v1874 = vpop.f32.mrb[0].mxu0
    %v1875 = vadd.f32 %v1804, %v1874
    %v1876 = vpop.f32.mrb[0].mxu0
    %1877 = vdwg.mxu0
    %vm1878 = vcmask 41984
    %1879 = vst.msk [vmem:[#allocation6] sm:$0x3] %vm1878, %v1875
    // Predicated region
    $region26: #{tpu_custom_call.1} parent=1 // pred_check
      _
    $region27: #{tpu_custom_call.1} parent=1 // pred_check_branch
      %1881 = sbr.rel (0) target = $region29
    $region28: #{tpu_custom_call.1} parent=1 // pred_region
      %s1883 = ssub.s32 32, 32
      %1884 = vsyncadd [#allocation5], %s1883
      %s1886 = sshll.u32 [#allocation6], 4
      %s1887 = int_to_ptr.vmem [resolvable:$true] %s1886
      %1889 = dma.vmem_to_hbm [thread:$0]  %s1887, 32, %s5, [#allocation5]
    $region29: #{tpu_custom_call.1} parent=1 // pred_fallthru
      _
    // Predicated region
    $region30: #{tpu_custom_call.1} parent=1 // pred_check
      _
    $region31: #{tpu_custom_call.1} parent=1 // pred_check_branch
      %1891 = sbr.rel (0) target = $region33
    $region32: #{tpu_custom_call.1} parent=1 // pred_region
      %s1893 = ssub.s32 64, 64
      %1894 = vsyncadd [#allocation8], %s1893
      %s1895 = sshll.u32 [#allocation7], 4
      %s1896 = int_to_ptr.vmem [resolvable:$true] %s1895
      %1901 = dma.vmem_to_hbm [thread:$0]  %s1896, 64, %s6, [#allocation8], 32, 32, 2
    $region33: #{tpu_custom_call.1} parent=1 // pred_fallthru
      _
    // Predicated region
    $region34: #{tpu_custom_call.1} parent=1 // pred_check
      _
    $region35: #{tpu_custom_call.1} parent=1 // pred_check_branch
      %1903 = sbr.rel (0) target = $region37
    $region36: #{tpu_custom_call.1} parent=1 // pred_region
      %s1905 = ssub.s32 64, 64
      %1906 = vsyncadd [#allocation8], %s1905
      %s1907 = sshll.u32 [#allocation9], 4
      %s1908 = int_to_ptr.vmem [resolvable:$true] %s1907
      %1913 = dma.vmem_to_hbm [thread:$0]  %s1908, 64, %s7, [#allocation8], 32, 32, 2
    $region37: #{tpu_custom_call.1} parent=1 // pred_fallthru
      _
    // Predicated region
    $region38: #{tpu_custom_call.1} parent=1 // pred_check
      _
    $region39: #{tpu_custom_call.1} parent=1 // pred_check_branch
      %1915 = sbr.rel (0) target = $region41
    $region40: #{tpu_custom_call.1} parent=1 // pred_region
      %1916 = dma.done [#allocation5], 32
    $region41: #{tpu_custom_call.1} parent=1 // pred_fallthru
      _
    // Predicated region
    $region42: #{tpu_custom_call.1} parent=1 // pred_check
      _
    $region43: #{tpu_custom_call.1} parent=1 // pred_check_branch
      %1918 = sbr.rel (0) target = $region45
    $region44: #{tpu_custom_call.1} parent=1 // pred_region
      %1919 = dma.done [#allocation8], 64
    $region45: #{tpu_custom_call.1} parent=1 // pred_fallthru
      _
    // Predicated region
    $region46: #{tpu_custom_call.1} parent=1 // pred_check
      _
    $region47: #{tpu_custom_call.1} parent=1 // pred_check_branch
      %1921 = sbr.rel (0) target = $region49
    $region48: #{tpu_custom_call.1} parent=1 // pred_region
      %1922 = dma.done [#allocation8], 64
    $region49: #{tpu_custom_call.1} parent=1 // pred_fallthru
      _
    %1923 = vsyncpa [#allocation4], 1
    %1924 = vsyncpa [#allocation5], 1
    %1925 = vsyncpa [#allocation8], 1

</llo_original>
